<compile_context>
chip_gen: v7x
topology: tpu7x:2x2x1
jax: 0.10.0
libtpu: 0.0.40
codegen_flags: <defaults>
</compile_context>

<pallas_src>
import jax
import jax.numpy as jnp
from jax.experimental import pallas as pl
from jax.experimental.pallas import tpu as pltpu

# BlendParams defaults (pytorch3d.renderer.blending.BlendParams)
SIGMA = 1e-4
GAMMA = 1e-4
BACKGROUND = (1.0, 1.0, 1.0)
ZNEAR = 1.0
ZFAR = 100.0
EPS = 1e-10

INV_SIGMA = 1.0 / SIGMA
INV_GAMMA = 1.0 / GAMMA
INV_ZRANGE = 1.0 / (ZFAR - ZNEAR)

MAX_TILE = 4096  # lane-dense pixel tile (review: 2048-8192; 4096 fits default scoped VMEM everywhere)


def _shader_kernel(p2f_ref, bary_ref, dists_ref, zbuf_ref, colors_ref, out_ref):
    # p2f_ref   : (K, TP)          int32  pix_to_face (-1 = empty slot)
    # bary_ref  : (K, 3, TP)       f32    barycentric coords
    # dists_ref : (K, TP)          f32    signed pixel-to-face distances
    # zbuf_ref  : (K, TP)          f32    z buffer
    # colors_ref: (3, 3*F_pad)     f32    color table, colors_ref[c, v*F_pad + f] = color[f, v, c]
    # out_ref   : (4, TP)          f32    RGBA
    K, TP = p2f_ref.shape
    F_pad = colors_ref.shape[1] // 3

    p2f = p2f_ref[...]                                            # (K, TP) int32
    bary = bary_ref[...]                                          # (K, 3, TP)
    dists = dists_ref[...]                                        # (K, TP)
    zbuf = zbuf_ref[...]                                          # (K, TP)

    mask = (p2f >= 0).astype(jnp.float32)                         # (K, TP)

    # softmax_rgb_blend weights (divisions replaced by constant multiplies)
    prob = jax.nn.sigmoid(dists * (-INV_SIGMA)) * mask            # (K, TP)
    one_minus = 1.0 - prob
    alpha = one_minus[0:1, :]
    for k in range(1, K):                                         # static K, explicit product
        alpha = alpha * one_minus[k:k + 1, :]                     # (1, TP)

    z_inv = (ZFAR - zbuf) * INV_ZRANGE * mask                     # (K, TP)
    z_inv_max = jnp.maximum(jnp.max(z_inv, axis=0, keepdims=True), EPS)   # (1, TP)
    w = prob * jnp.exp((z_inv - z_inv_max) * INV_GAMMA)           # (K, TP)
    delta = jnp.maximum(jnp.exp((EPS - z_inv_max) * INV_GAMMA), EPS)      # (1, TP)
    denom = jnp.sum(w, axis=0, keepdims=True) + delta             # (1, TP)
    inv_denom = 1.0 / denom                                       # single (1, TP) reciprocal row

    # Fused texture gather + barycentric interp + weighting:
    #   weighted_colors[c, p] = sum_{f, v} colors[f, v, c] * sum_k w[k,p] * bary[k,v,p] * [p2f[k,p] == f]
    # Build the scatter matrix on the VPU, contract on the MXU.  Empty slots (p2f == -1) never
    # match the iota so they contribute exactly zero (the sample_textures masking).
    iota_f = jax.lax.broadcasted_iota(jnp.int32, (F_pad, TP), 0)
    s_parts = [None, None, None]
    for k in range(K):
        onehot = (iota_f == p2f[k:k + 1, :]).astype(jnp.float32)  # (F_pad, TP)
        w_k = w[k:k + 1, :]
        for v in range(3):
            coef = w_k * bary[k, v:v + 1, :]                      # (1, TP)
            contrib = onehot * coef                               # (F_pad, TP)
            s_parts[v] = contrib if s_parts[v] is None else s_parts[v] + contrib
    scat = jnp.concatenate(s_parts, axis=0)                       # (3*F_pad, TP), row = v*F_pad + f
    weighted_colors = jnp.dot(colors_ref[...], scat,
                              preferred_element_type=jnp.float32,
                              precision=jax.lax.Precision.HIGHEST)        # (3, TP), f32-exact

    # Background folded in as Python scalar constants (no captured f32[3] array).
    delta_bg = jnp.concatenate([delta * BACKGROUND[0],
                                delta * BACKGROUND[1],
                                delta * BACKGROUND[2]], axis=0)   # (3, TP)
    rgb = (weighted_colors + delta_bg) * inv_denom                # (3, TP)

    # single wide lane-dense store
    out_ref[...] = jnp.concatenate([rgb, 1.0 - alpha], axis=0)    # (4, TP)


def lightless_shader(pix_to_face, bary_coords, dists, zbuf, faces_verts_colors,
                     *, max_tile=MAX_TILE):
    """Equivalent of Lightless_Shader.forward.

    Args (PyTorch3D conventions):
      pix_to_face:        (N, H, W, K) int32, -1 for empty fragment slots
      bary_coords:        (N, H, W, K, 3) f32
      dists:              (N, H, W, K) f32
      zbuf:               (N, H, W, K) f32
      faces_verts_colors: (F, 3, 3) f32  per-face per-vertex RGB (TexturesVertex)
    Returns:
      images: (N, H, W, 4) f32 RGBA
    """
    N, H, W, K = pix_to_face.shape
    F = faces_verts_colors.shape[0]
    P = N * H * W

    # Lane-aligned pixel tile; pad the flattened pixel axis to a multiple of the tile.
    TP = min(max_tile, ((P + 127) // 128) * 128)
    P_pad = ((P + TP - 1) // TP) * TP

    # Pixel-last (lane-dense) layout for the small per-fragment buffers (24 B/pixel of relayout).
    # TODO(synk): keep fragment buffers pixel-last upstream to remove even these transposes.
    p2f_t = pix_to_face.reshape(P, K).T.astype(jnp.int32)                  # (K, P)
    bary_t = bary_coords.reshape(P, K, 3).transpose(1, 2, 0).astype(jnp.float32)  # (K, 3, P)
    dists_t = dists.reshape(P, K).T.astype(jnp.float32)                    # (K, P)
    zbuf_t = zbuf.reshape(P, K).T.astype(jnp.float32)                      # (K, P)
    if P_pad != P:
        pad = P_pad - P
        p2f_t = jnp.pad(p2f_t, ((0, 0), (0, pad)), constant_values=-1)     # empty slots
        bary_t = jnp.pad(bary_t, ((0, 0), (0, 0), (0, pad)))
        dists_t = jnp.pad(dists_t, ((0, 0), (0, pad)))
        zbuf_t = jnp.pad(zbuf_t, ((0, 0), (0, pad)))

    # Tiny color table (F*36 bytes) reshaped to (3 channels, 3*F_pad); zero-padded faces are
    # never selected by the one-hot.
    F_pad = ((F + 7) // 8) * 8
    ctab = jnp.transpose(faces_verts_colors.astype(jnp.float32), (2, 1, 0))  # (chan, vert, face)
    ctab = jnp.pad(ctab, ((0, 0), (0, 0), (0, F_pad - F)))
    colors_mat = ctab.reshape(3, 3 * F_pad)                                  # row = v*F_pad + f

    out = pl.pallas_call(
        _shader_kernel,
        out_shape=jax.ShapeDtypeStruct((4, P_pad), jnp.float32),
        grid_spec=pltpu.PrefetchScalarGridSpec(
            num_scalar_prefetch=0,
            grid=(P_pad // TP,),
            in_specs=[
                pl.BlockSpec((K, TP), lambda i: (0, i)),
                pl.BlockSpec((K, 3, TP), lambda i: (0, 0, i)),
                pl.BlockSpec((K, TP), lambda i: (0, i)),
                pl.BlockSpec((K, TP), lambda i: (0, i)),
                pl.BlockSpec((3, 3 * F_pad), lambda i: (0, 0)),   # full (tiny) color table each step
            ],
            out_specs=pl.BlockSpec((4, TP), lambda i: (0, i)),
        ),
        compiler_params=pltpu.CompilerParams(dimension_semantics=("parallel",)),
    )(p2f_t, bary_t, dists_t, zbuf_t, colors_mat)

    return out[:, :P].T.reshape(N, H, W, 4)


def _reference(pix_to_face, bary_coords, dists, zbuf, faces_verts_colors):
    """Pure-JAX reference mirroring pytorch3d sample_textures + softmax_rgb_blend."""
    mask = (pix_to_face >= 0).astype(jnp.float32)
    safe_idx = jnp.where(pix_to_face < 0, 0, pix_to_face)
    fvc = faces_verts_colors[safe_idx]                                     # (N,H,W,K,3,3)
    texels = jnp.sum(bary_coords[..., None] * fvc, axis=-2)                # (N,H,W,K,3)
    texels = texels * mask[..., None]

    prob = jax.nn.sigmoid(-dists / SIGMA) * mask
    alpha = jnp.prod(1.0 - prob, axis=-1)
    z_inv = (ZFAR - zbuf) / (ZFAR - ZNEAR) * mask
    z_inv_max = jnp.maximum(jnp.max(z_inv, axis=-1, keepdims=True), EPS)
    weights_num = prob * jnp.exp((z_inv - z_inv_max) / GAMMA)
    delta = jnp.maximum(jnp.exp((EPS - z_inv_max) / GAMMA), EPS)
    denom = jnp.sum(weights_num, axis=-1, keepdims=True) + delta
    weighted_colors = jnp.sum(weights_num[..., None] * texels, axis=-2)
    bg = jnp.array(BACKGROUND, dtype=jnp.float32)
    rgb = (weighted_colors + delta * bg) / denom
    return jnp.concatenate([rgb, (1.0 - alpha)[..., None]], axis=-1)


if __name__ == "__main__":
    key = jax.random.PRNGKey(0)
    N, H, W, K, F = 2, 16, 16, 4, 20  # batch, image height/width, faces-per-pixel, num faces

    k1, k2, k3, k4, k5 = jax.random.split(key, 5)
    pix_to_face = jax.random.randint(k1, (N, H, W, K), minval=-1, maxval=F, dtype=jnp.int32)
    bary_coords = jax.nn.softmax(jax.random.normal(k2, (N, H, W, K, 3), dtype=jnp.float32), axis=-1)
    dists = jax.random.normal(k3, (N, H, W, K), dtype=jnp.float32) * 1e-4
    zbuf = jax.random.uniform(k4, (N, H, W, K), dtype=jnp.float32, minval=ZNEAR, maxval=ZFAR)
    faces_verts_colors = jax.random.uniform(k5, (F, 3, 3), dtype=jnp.float32)

    images = lightless_shader(pix_to_face, bary_coords, dists, zbuf, faces_verts_colors)
    images = jax.block_until_ready(images)

    ref = _reference(pix_to_face, bary_coords, dists, zbuf, faces_verts_colors)
    assert images.shape == (N, H, W, 4)
    assert jnp.allclose(images, ref, rtol=1e-5, atol=1e-5), "mismatch vs pure-JAX reference"

    print("KERNEL_OK")
</pallas_src>

<mosaic_0001>
module attributes {stable_mosaic.version = 11 : i64} {
  func.func @_shader_kernel(%arg0: i32, %arg1: memref<4x512xi32, #tpu.memory_space<vmem>>, %arg2: memref<4x3x512xf32, #tpu.memory_space<vmem>>, %arg3: memref<4x512xf32, #tpu.memory_space<vmem>>, %arg4: memref<4x512xf32, #tpu.memory_space<vmem>>, %arg5: memref<3x72xf32, #tpu.memory_space<vmem>>, %arg6: memref<4x512xf32, #tpu.memory_space<vmem>>) attributes {dimension_semantics = [#tpu.dimension_semantics<parallel>], iteration_bounds = array<i64: 1>, scalar_prefetch = 0 : i64, scratch_operands = 0 : i64, tpu.core_type = #tpu.core_type<tc>, window_params = [{transform_indices = @transform_0, window_bounds = array<i64: 4, 512>}, {transform_indices = @transform_1, window_bounds = array<i64: 4, 3, 512>}, {transform_indices = @transform_2, window_bounds = array<i64: 4, 512>}, {transform_indices = @transform_3, window_bounds = array<i64: 4, 512>}, {pipeline_mode = #tpu.pipeline_mode<synchronous>, transform_indices = @transform_4, window_bounds = array<i64: 3, 72>}, {transform_indices = @transform_5, window_bounds = array<i64: 4, 512>}]} {
    %c0 = arith.constant 0 : index
    %c0_0 = arith.constant 0 : index
    %0 = vector.load %arg1[%c0, %c0_0] : memref<4x512xi32, #tpu.memory_space<vmem>>, vector<4x512xi32>
    %c0_1 = arith.constant 0 : index
    %c0_2 = arith.constant 0 : index
    %c0_3 = arith.constant 0 : index
    %1 = vector.load %arg2[%c0_1, %c0_2, %c0_3] : memref<4x3x512xf32, #tpu.memory_space<vmem>>, vector<4x3x512xf32>
    %c0_4 = arith.constant 0 : index
    %c0_5 = arith.constant 0 : index
    %2 = vector.load %arg3[%c0_4, %c0_5] : memref<4x512xf32, #tpu.memory_space<vmem>>, vector<4x512xf32>
    %c0_6 = arith.constant 0 : index
    %c0_7 = arith.constant 0 : index
    %3 = vector.load %arg4[%c0_6, %c0_7] : memref<4x512xf32, #tpu.memory_space<vmem>>, vector<4x512xf32>
    %c0_i32 = arith.constant 0 : i32
    %4 = vector.broadcast %c0_i32 : i32 to vector<4x512xi32>
    %5 = arith.cmpi sge, %0, %4 : vector<4x512xi32>
    %6 = arith.extui %5 : vector<4x512xi1> to vector<4x512xi32>
    %7 = arith.sitofp %6 : vector<4x512xi32> to vector<4x512xf32>
    %cst = arith.constant -1.000000e+04 : f32
    %8 = vector.broadcast %cst : f32 to vector<4x512xf32>
    %9 = arith.mulf %2, %8 : vector<4x512xf32>
    %10 = arith.negf %9 : vector<4x512xf32>
    %11 = math.exp %10 : vector<4x512xf32>
    %cst_8 = arith.constant 1.000000e+00 : f32
    %12 = vector.broadcast %cst_8 : f32 to vector<4x512xf32>
    %13 = arith.addf %12, %11 : vector<4x512xf32>
    %14 = arith.divf %12, %13 : vector<4x512xf32>
    %15 = arith.mulf %14, %7 : vector<4x512xf32>
    %cst_9 = arith.constant 1.000000e+00 : f32
    %16 = vector.broadcast %cst_9 : f32 to vector<4x512xf32>
    %17 = arith.subf %16, %15 : vector<4x512xf32>
    %18 = vector.extract_strided_slice %17 {offsets = [0, 0], sizes = [1, 512], strides = [1, 1]} : vector<4x512xf32> to vector<1x512xf32>
    %19 = vector.extract_strided_slice %17 {offsets = [1, 0], sizes = [1, 512], strides = [1, 1]} : vector<4x512xf32> to vector<1x512xf32>
    %20 = arith.mulf %18, %19 : vector<1x512xf32>
    %21 = vector.extract_strided_slice %17 {offsets = [2, 0], sizes = [1, 512], strides = [1, 1]} : vector<4x512xf32> to vector<1x512xf32>
    %22 = arith.mulf %20, %21 : vector<1x512xf32>
    %23 = vector.extract_strided_slice %17 {offsets = [3, 0], sizes = [1, 512], strides = [1, 1]} : vector<4x512xf32> to vector<1x512xf32>
    %24 = arith.mulf %22, %23 : vector<1x512xf32>
    %cst_10 = arith.constant 1.000000e+02 : f32
    %25 = vector.broadcast %cst_10 : f32 to vector<4x512xf32>
    %26 = arith.subf %25, %3 : vector<4x512xf32>
    %cst_11 = arith.constant 0.0101010101 : f32
    %27 = vector.broadcast %cst_11 : f32 to vector<4x512xf32>
    %28 = arith.mulf %26, %27 : vector<4x512xf32>
    %29 = arith.mulf %28, %7 : vector<4x512xf32>
    %cst_12 = arith.constant dense<0xFF800000> : vector<512xf32>
    %30 = vector.multi_reduction <maximumf>, %29, %cst_12 [0] : vector<4x512xf32> to vector<512xf32>
    %31 = vector.shape_cast %30 : vector<512xf32> to vector<1x512xf32>
    %cst_13 = arith.constant 1.000000e-10 : f32
    %32 = vector.broadcast %cst_13 : f32 to vector<1x512xf32>
    %33 = arith.maximumf %31, %32 : vector<1x512xf32>
    %34 = vector.broadcast %33 : vector<1x512xf32> to vector<4x512xf32>
    %35 = arith.subf %29, %34 : vector<4x512xf32>
    %cst_14 = arith.constant 1.000000e+04 : f32
    %36 = vector.broadcast %cst_14 : f32 to vector<4x512xf32>
    %37 = arith.mulf %35, %36 : vector<4x512xf32>
    %38 = math.exp %37 : vector<4x512xf32>
    %39 = arith.mulf %15, %38 : vector<4x512xf32>
    %cst_15 = arith.constant 1.000000e-10 : f32
    %40 = vector.broadcast %cst_15 : f32 to vector<1x512xf32>
    %41 = arith.subf %40, %33 : vector<1x512xf32>
    %cst_16 = arith.constant 1.000000e+04 : f32
    %42 = vector.broadcast %cst_16 : f32 to vector<1x512xf32>
    %43 = arith.mulf %41, %42 : vector<1x512xf32>
    %44 = math.exp %43 : vector<1x512xf32>
    %cst_17 = arith.constant 1.000000e-10 : f32
    %45 = vector.broadcast %cst_17 : f32 to vector<1x512xf32>
    %46 = arith.maximumf %44, %45 : vector<1x512xf32>
    %cst_18 = arith.constant dense<0.000000e+00> : vector<512xf32>
    %47 = vector.multi_reduction <add>, %39, %cst_18 [0] : vector<4x512xf32> to vector<512xf32>
    %48 = vector.shape_cast %47 : vector<512xf32> to vector<1x512xf32>
    %49 = arith.addf %48, %46 : vector<1x512xf32>
    %cst_19 = arith.constant 1.000000e+00 : f32
    %50 = vector.broadcast %cst_19 : f32 to vector<1x512xf32>
    %51 = arith.divf %50, %49 : vector<1x512xf32>
    %52 = tpu.iota {dimensions = array<i32: 0>} : vector<24x512xi32>
    %53 = vector.extract_strided_slice %0 {offsets = [0, 0], sizes = [1, 512], strides = [1, 1]} : vector<4x512xi32> to vector<1x512xi32>
    %54 = vector.broadcast %53 : vector<1x512xi32> to vector<24x512xi32>
    %55 = arith.cmpi eq, %52, %54 : vector<24x512xi32>
    %56 = arith.extui %55 : vector<24x512xi1> to vector<24x512xi32>
    %57 = arith.sitofp %56 : vector<24x512xi32> to vector<24x512xf32>
    %58 = vector.extract_strided_slice %39 {offsets = [0, 0], sizes = [1, 512], strides = [1, 1]} : vector<4x512xf32> to vector<1x512xf32>
    %59 = vector.extract_strided_slice %1 {offsets = [0, 0, 0], sizes = [1, 1, 512], strides = [1, 1, 1]} : vector<4x3x512xf32> to vector<1x1x512xf32>
    %60 = vector.shape_cast %59 : vector<1x1x512xf32> to vector<1x512xf32>
    %61 = arith.mulf %58, %60 : vector<1x512xf32>
    %62 = vector.broadcast %61 : vector<1x512xf32> to vector<24x512xf32>
    %63 = arith.mulf %57, %62 : vector<24x512xf32>
    %64 = vector.extract_strided_slice %1 {offsets = [0, 1, 0], sizes = [1, 1, 512], strides = [1, 1, 1]} : vector<4x3x512xf32> to vector<1x1x512xf32>
    %65 = vector.shape_cast %64 : vector<1x1x512xf32> to vector<1x512xf32>
    %66 = arith.mulf %58, %65 : vector<1x512xf32>
    %67 = vector.broadcast %66 : vector<1x512xf32> to vector<24x512xf32>
    %68 = arith.mulf %57, %67 : vector<24x512xf32>
    %69 = vector.extract_strided_slice %1 {offsets = [0, 2, 0], sizes = [1, 1, 512], strides = [1, 1, 1]} : vector<4x3x512xf32> to vector<1x1x512xf32>
    %70 = vector.shape_cast %69 : vector<1x1x512xf32> to vector<1x512xf32>
    %71 = arith.mulf %58, %70 : vector<1x512xf32>
    %72 = vector.broadcast %71 : vector<1x512xf32> to vector<24x512xf32>
    %73 = arith.mulf %57, %72 : vector<24x512xf32>
    %74 = vector.extract_strided_slice %0 {offsets = [1, 0], sizes = [1, 512], strides = [1, 1]} : vector<4x512xi32> to vector<1x512xi32>
    %75 = vector.broadcast %74 : vector<1x512xi32> to vector<24x512xi32>
    %76 = arith.cmpi eq, %52, %75 : vector<24x512xi32>
    %77 = arith.extui %76 : vector<24x512xi1> to vector<24x512xi32>
    %78 = arith.sitofp %77 : vector<24x512xi32> to vector<24x512xf32>
    %79 = vector.extract_strided_slice %39 {offsets = [1, 0], sizes = [1, 512], strides = [1, 1]} : vector<4x512xf32> to vector<1x512xf32>
    %80 = vector.extract_strided_slice %1 {offsets = [1, 0, 0], sizes = [1, 1, 512], strides = [1, 1, 1]} : vector<4x3x512xf32> to vector<1x1x512xf32>
    %81 = vector.shape_cast %80 : vector<1x1x512xf32> to vector<1x512xf32>
    %82 = arith.mulf %79, %81 : vector<1x512xf32>
    %83 = vector.broadcast %82 : vector<1x512xf32> to vector<24x512xf32>
    %84 = arith.mulf %78, %83 : vector<24x512xf32>
    %85 = arith.addf %63, %84 : vector<24x512xf32>
    %86 = vector.extract_strided_slice %1 {offsets = [1, 1, 0], sizes = [1, 1, 512], strides = [1, 1, 1]} : vector<4x3x512xf32> to vector<1x1x512xf32>
    %87 = vector.shape_cast %86 : vector<1x1x512xf32> to vector<1x512xf32>
    %88 = arith.mulf %79, %87 : vector<1x512xf32>
    %89 = vector.broadcast %88 : vector<1x512xf32> to vector<24x512xf32>
    %90 = arith.mulf %78, %89 : vector<24x512xf32>
    %91 = arith.addf %68, %90 : vector<24x512xf32>
    %92 = vector.extract_strided_slice %1 {offsets = [1, 2, 0], sizes = [1, 1, 512], strides = [1, 1, 1]} : vector<4x3x512xf32> to vector<1x1x512xf32>
    %93 = vector.shape_cast %92 : vector<1x1x512xf32> to vector<1x512xf32>
    %94 = arith.mulf %79, %93 : vector<1x512xf32>
    %95 = vector.broadcast %94 : vector<1x512xf32> to vector<24x512xf32>
    %96 = arith.mulf %78, %95 : vector<24x512xf32>
    %97 = arith.addf %73, %96 : vector<24x512xf32>
    %98 = vector.extract_strided_slice %0 {offsets = [2, 0], sizes = [1, 512], strides = [1, 1]} : vector<4x512xi32> to vector<1x512xi32>
    %99 = vector.broadcast %98 : vector<1x512xi32> to vector<24x512xi32>
    %100 = arith.cmpi eq, %52, %99 : vector<24x512xi32>
    %101 = arith.extui %100 : vector<24x512xi1> to vector<24x512xi32>
    %102 = arith.sitofp %101 : vector<24x512xi32> to vector<24x512xf32>
    %103 = vector.extract_strided_slice %39 {offsets = [2, 0], sizes = [1, 512], strides = [1, 1]} : vector<4x512xf32> to vector<1x512xf32>
    %104 = vector.extract_strided_slice %1 {offsets = [2, 0, 0], sizes = [1, 1, 512], strides = [1, 1, 1]} : vector<4x3x512xf32> to vector<1x1x512xf32>
    %105 = vector.shape_cast %104 : vector<1x1x512xf32> to vector<1x512xf32>
    %106 = arith.mulf %103, %105 : vector<1x512xf32>
    %107 = vector.broadcast %106 : vector<1x512xf32> to vector<24x512xf32>
    %108 = arith.mulf %102, %107 : vector<24x512xf32>
    %109 = arith.addf %85, %108 : vector<24x512xf32>
    %110 = vector.extract_strided_slice %1 {offsets = [2, 1, 0], sizes = [1, 1, 512], strides = [1, 1, 1]} : vector<4x3x512xf32> to vector<1x1x512xf32>
    %111 = vector.shape_cast %110 : vector<1x1x512xf32> to vector<1x512xf32>
    %112 = arith.mulf %103, %111 : vector<1x512xf32>
    %113 = vector.broadcast %112 : vector<1x512xf32> to vector<24x512xf32>
    %114 = arith.mulf %102, %113 : vector<24x512xf32>
    %115 = arith.addf %91, %114 : vector<24x512xf32>
    %116 = vector.extract_strided_slice %1 {offsets = [2, 2, 0], sizes = [1, 1, 512], strides = [1, 1, 1]} : vector<4x3x512xf32> to vector<1x1x512xf32>
    %117 = vector.shape_cast %116 : vector<1x1x512xf32> to vector<1x512xf32>
    %118 = arith.mulf %103, %117 : vector<1x512xf32>
    %119 = vector.broadcast %118 : vector<1x512xf32> to vector<24x512xf32>
    %120 = arith.mulf %102, %119 : vector<24x512xf32>
    %121 = arith.addf %97, %120 : vector<24x512xf32>
    %122 = vector.extract_strided_slice %0 {offsets = [3, 0], sizes = [1, 512], strides = [1, 1]} : vector<4x512xi32> to vector<1x512xi32>
    %123 = vector.broadcast %122 : vector<1x512xi32> to vector<24x512xi32>
    %124 = arith.cmpi eq, %52, %123 : vector<24x512xi32>
    %125 = arith.extui %124 : vector<24x512xi1> to vector<24x512xi32>
    %126 = arith.sitofp %125 : vector<24x512xi32> to vector<24x512xf32>
    %127 = vector.extract_strided_slice %39 {offsets = [3, 0], sizes = [1, 512], strides = [1, 1]} : vector<4x512xf32> to vector<1x512xf32>
    %128 = vector.extract_strided_slice %1 {offsets = [3, 0, 0], sizes = [1, 1, 512], strides = [1, 1, 1]} : vector<4x3x512xf32> to vector<1x1x512xf32>
    %129 = vector.shape_cast %128 : vector<1x1x512xf32> to vector<1x512xf32>
    %130 = arith.mulf %127, %129 : vector<1x512xf32>
    %131 = vector.broadcast %130 : vector<1x512xf32> to vector<24x512xf32>
    %132 = arith.mulf %126, %131 : vector<24x512xf32>
    %133 = arith.addf %109, %132 : vector<24x512xf32>
    %134 = vector.extract_strided_slice %1 {offsets = [3, 1, 0], sizes = [1, 1, 512], strides = [1, 1, 1]} : vector<4x3x512xf32> to vector<1x1x512xf32>
    %135 = vector.shape_cast %134 : vector<1x1x512xf32> to vector<1x512xf32>
    %136 = arith.mulf %127, %135 : vector<1x512xf32>
    %137 = vector.broadcast %136 : vector<1x512xf32> to vector<24x512xf32>
    %138 = arith.mulf %126, %137 : vector<24x512xf32>
    %139 = arith.addf %115, %138 : vector<24x512xf32>
    %140 = vector.extract_strided_slice %1 {offsets = [3, 2, 0], sizes = [1, 1, 512], strides = [1, 1, 1]} : vector<4x3x512xf32> to vector<1x1x512xf32>
    %141 = vector.shape_cast %140 : vector<1x1x512xf32> to vector<1x512xf32>
    %142 = arith.mulf %127, %141 : vector<1x512xf32>
    %143 = vector.broadcast %142 : vector<1x512xf32> to vector<24x512xf32>
    %144 = arith.mulf %126, %143 : vector<24x512xf32>
    %145 = arith.addf %121, %144 : vector<24x512xf32>
    %146 = tpu.concatenate %133, %139, %145 in 0 : vector<24x512xf32>, vector<24x512xf32>, vector<24x512xf32> -> vector<72x512xf32>
    %c0_20 = arith.constant 0 : index
    %c0_21 = arith.constant 0 : index
    %147 = vector.load %arg5[%c0_20, %c0_21] : memref<3x72xf32, #tpu.memory_space<vmem>>, vector<3x72xf32>
    %cst_22 = arith.constant dense<0.000000e+00> : vector<3x512xf32>
    %148 = tpu.matmul %147, %146, %cst_22 {dimension_numbers = #tpu.dot_dimension_numbers<[1], [0], [0], [1], [0, 0, 1, 1], [], []>, precision = #tpu.contract_precision<fp32>} : vector<3x72xf32>, vector<72x512xf32>, vector<3x512xf32> -> vector<3x512xf32>
    %cst_23 = arith.constant 1.000000e+00 : f32
    %149 = vector.broadcast %cst_23 : f32 to vector<1x512xf32>
    %150 = arith.mulf %46, %149 : vector<1x512xf32>
    %cst_24 = arith.constant 1.000000e+00 : f32
    %151 = vector.broadcast %cst_24 : f32 to vector<1x512xf32>
    %152 = arith.mulf %46, %151 : vector<1x512xf32>
    %cst_25 = arith.constant 1.000000e+00 : f32
    %153 = vector.broadcast %cst_25 : f32 to vector<1x512xf32>
    %154 = arith.mulf %46, %153 : vector<1x512xf32>
    %155 = tpu.concatenate %150, %152, %154 in 0 : vector<1x512xf32>, vector<1x512xf32>, vector<1x512xf32> -> vector<3x512xf32>
    %156 = arith.addf %148, %155 : vector<3x512xf32>
    %157 = vector.broadcast %51 : vector<1x512xf32> to vector<3x512xf32>
    %158 = arith.mulf %156, %157 : vector<3x512xf32>
    %cst_26 = arith.constant 1.000000e+00 : f32
    %159 = vector.broadcast %cst_26 : f32 to vector<1x512xf32>
    %160 = arith.subf %159, %24 : vector<1x512xf32>
    %161 = tpu.concatenate %158, %160 in 0 : vector<3x512xf32>, vector<1x512xf32> -> vector<4x512xf32>
    %c0_27 = arith.constant 0 : index
    %c0_28 = arith.constant 0 : index
    %162 = vector.load %arg6[%c0_27, %c0_28] : memref<4x512xf32, #tpu.memory_space<vmem>>, vector<4x512xf32>
    tpu.vector_store %arg6[%c0_27, %c0_28], %161 {strides = array<i32>} : memref<4x512xf32, #tpu.memory_space<vmem>>, vector<4x512xf32>,
    return
  }
  func.func @transform_0(%arg0: i32) -> (i32, i32) {
    %c0_i32 = arith.constant 0 : i32
    %c0_i32_0 = arith.constant 0 : i32
    return %c0_i32, %arg0 : i32, i32
  }
  func.func @transform_1(%arg0: i32) -> (i32, i32, i32) {
    %c0_i32 = arith.constant 0 : i32
    %c0_i32_0 = arith.constant 0 : i32
    %c0_i32_1 = arith.constant 0 : i32
    return %c0_i32, %c0_i32_0, %arg0 : i32, i32, i32
  }
  func.func @transform_2(%arg0: i32) -> (i32, i32) {
    %c0_i32 = arith.constant 0 : i32
    %c0_i32_0 = arith.constant 0 : i32
    return %c0_i32, %arg0 : i32, i32
  }
  func.func @transform_3(%arg0: i32) -> (i32, i32) {
    %c0_i32 = arith.constant 0 : i32
    %c0_i32_0 = arith.constant 0 : i32
    return %c0_i32, %arg0 : i32, i32
  }
  func.func @transform_4(%arg0: i32) -> (i32, i32) {
    %c0_i32 = arith.constant 0 : i32
    %c0_i32_0 = arith.constant 0 : i32
    %c0_i32_1 = arith.constant 0 : i32
    return %c0_i32, %c0_i32_0 : i32, i32
  }
  func.func @transform_5(%arg0: i32) -> (i32, i32) {
    %c0_i32 = arith.constant 0 : i32
    %c0_i32_0 = arith.constant 0 : i32
    return %c0_i32, %arg0 : i32, i32
  }
}

</mosaic_0001>

<llo_original>
// kernel: tpu_custom_call.1
$region0: #{tpu_custom_call.1}
  #allocation0 [shape = 'u32[]', space=smem, size = 0x4, offset = 0x4, fixed_abs, tag = 'smem constant byte address 0x4 - core index']
  #allocation1 [shape = 'u32[144,128]{1,0:T(1,128)}', space=vmem, size = 0x12000, scoped, tag = 'internal scratch']
  %s0 = inlined_call_operand.vmem [shape: s32[4,512], index: 0, kind: input, shape index: {}]
  %s1 = inlined_call_operand.vmem [shape: f32[4,3,512], index: 1, kind: input, shape index: {}]
  %s2 = inlined_call_operand.vmem [shape: f32[4,512], index: 2, kind: input, shape index: {}]
  %s3 = inlined_call_operand.vmem [shape: f32[4,512], index: 3, kind: input, shape index: {}]
  %s4 = inlined_call_operand.vmem [shape: f32[3,72], index: 4, kind: input, shape index: {}]
  %s5 = inlined_call_operand.hbm [shape: f32[4,512], index: 5, kind: output, shape index: {}]
  %s6 = sld [smem:[#allocation0]]
  $region30: #{tpu_custom_call.1} parent=0
    _
  %s8 = ssub.s32 1, %s6
  %s9 = scalar_select 0, %s8, %s6
  $region1: #{tpu_custom_call.1} parent=0
    #allocation2 [shape = 'u8[8192]{0}', space=vmem, size = 0x2000, scoped, tag = 'output window, operand 0, single buffered']
    #allocation3 [shape = 's32[1]{0}', space=sflag, size = 0x4, scoped, tag = 'scoped memory for tpu_custom_call.1']
    %10 = vsyncpa [#allocation3], 0
    // Predicated region
    $region2: #{tpu_custom_call.1} parent=1 // pred_check
      _
    $region3: #{tpu_custom_call.1} parent=1 // pred_check_branch
      %12 = sbr.rel (0) target = $region5
    $region4: #{tpu_custom_call.1} parent=1 // pred_region
      _
    $region5: #{tpu_custom_call.1} parent=1 // pred_fallthru
      _
    // Predicated region
    $region6: #{tpu_custom_call.1} parent=1 // pred_check
      _
    $region7: #{tpu_custom_call.1} parent=1 // pred_check_branch
      %14 = sbr.rel (0) target = $region9
    $region8: #{tpu_custom_call.1} parent=1 // pred_region
      _
    $region9: #{tpu_custom_call.1} parent=1 // pred_fallthru
      _
    // Predicated region
    $region10: #{tpu_custom_call.1} parent=1 // pred_check
      _
    $region11: #{tpu_custom_call.1} parent=1 // pred_check_branch
      %16 = sbr.rel (0) target = $region13
    $region12: #{tpu_custom_call.1} parent=1 // pred_region
      _
    $region13: #{tpu_custom_call.1} parent=1 // pred_fallthru
      _
    // Predicated region
    $region14: #{tpu_custom_call.1} parent=1 // pred_check
      _
    $region15: #{tpu_custom_call.1} parent=1 // pred_check_branch
      %18 = sbr.rel (0) target = $region17
    $region16: #{tpu_custom_call.1} parent=1 // pred_region
      _
    $region17: #{tpu_custom_call.1} parent=1 // pred_fallthru
      _
    // Predicated region
    $region18: #{tpu_custom_call.1} parent=1 // pred_check
      _
    $region19: #{tpu_custom_call.1} parent=1 // pred_check_branch
      %20 = sbr.rel (0) target = $region21
    $region20: #{tpu_custom_call.1} parent=1 // pred_region
      _
    $region21: #{tpu_custom_call.1} parent=1 // pred_fallthru
      _
    %v21 = vld [vmem:[%s0] sm:$0xff]
    %v22 = vld [vmem:[%s0 + $0x8] sm:$0xff]
    %v23 = vld [vmem:[%s1] sm:$0x77]
    %v24 = vld [vmem:[%s1 + $0x8] sm:$0x77]
    %v25 = vld [vmem:[%s1 + $0x10] sm:$0x77]
    %v26 = vld [vmem:[%s1 + $0x18] sm:$0x77]
    %v27 = vld [vmem:[%s1 + $0x20] sm:$0x77]
    %v28 = vld [vmem:[%s1 + $0x28] sm:$0x77]
    %v29 = vld [vmem:[%s1 + $0x30] sm:$0x77]
    %v30 = vld [vmem:[%s1 + $0x38] sm:$0x77]
    %v31 = vld [vmem:[%s2] sm:$0xff]
    %v32 = vld [vmem:[%s2 + $0x8] sm:$0xff]
    %v33 = vld [vmem:[%s3] sm:$0xff]
    %v34 = vld [vmem:[%s3 + $0x8] sm:$0xff]
    %vm35 = vcmp.ge.s32.totalorder %v21, 0
    %vm36 = vcmp.ge.s32.totalorder %v22, 0
    %v37 = vsel %vm35, 1, 0
    %v38 = vsel %vm36, 1, 0
    %v39 = vcvt.s32.f32 %v37
    %v40 = vcvt.s32.f32 %v38
    %v41 = vmul.f32 %v31, -10000.0
    %v42 = vmul.f32 %v32, -10000.0
    %v43 = vxor.u32 %v41, 2147483648
    %v44 = vxor.u32 %v42, 2147483648
    %v45 = vmul.f32 %v43, 1.442695
    %v46 = vpow.pop %v45
    %v47 = vmul.f32 %v44, 1.442695
    %v48 = vpow.pop %v47
    %v49 = vadd.f32 %v46, 1.0
    %v50 = vadd.f32 %v48, 1.0
    %v51 = vrcp.pop %v49
    %v52 = vmul.f32 1.0, %v51
    %v53 = vrcp.pop %v50
    %v54 = vmul.f32 1.0, %v53
    %v55 = vmul.f32 %v52, %v39
    %v56 = vmul.f32 %v54, %v40
    %v57 = vsub.f32 1.0, %v55
    %v58 = vsub.f32 1.0, %v56
    %v61 = vrot.slane %v57, 5
    %v62 = vrot.slane %v61, 4
    %v63 = vrot.slane %v58, 5
    %v64 = vrot.slane %v63, 4
    %v67 = vmul.f32 %v57, %v62
    %v68 = vmul.f32 %v58, %v64
    %v69 = vrot.slane %v57, 6
    %v70 = vrot.slane %v69, 4
    %v71 = vrot.slane %v58, 6
    %v72 = vrot.slane %v71, 4
    %v75 = vmul.f32 %v67, %v70
    %v76 = vmul.f32 %v68, %v72
    %v77 = vrot.slane %v57, 7
    %v78 = vrot.slane %v77, 4
    %v79 = vrot.slane %v58, 7
    %v80 = vrot.slane %v79, 4
    %v83 = vmul.f32 %v75, %v78
    %v84 = vmul.f32 %v76, %v80
    %v85 = vsub.f32 100.0, %v33
    %v86 = vsub.f32 100.0, %v34
    %v87 = vmul.f32 %v85, 0.01010101
    %v88 = vmul.f32 %v86, 0.01010101
    %v89 = vmul.f32 %v87, %v39
    %v90 = vmul.f32 %v88, %v40
    %v93 = vcombine.high %v89, %v89
    %v94 = vcombine.high %v90, %v90
    %vm97 = vcmask 1043456
    %v98 = vsel %vm97, %v89, -inf
    %v99 = vrot.slane %v98, 4
    %v100 = vmax.f32 %v98, %v99
    %v101 = vrot.slane %v100, 2
    %v102 = vmax.f32 %v100, %v101
    %v103 = vrot.slane %v102, 1
    %v104 = vmax.f32 %v102, %v103
    %v105 = vsel %vm97, %v93, -inf
    %v106 = vrot.slane %v105, 4
    %v107 = vmax.f32 %v105, %v106
    %v108 = vrot.slane %v107, 2
    %v109 = vmax.f32 %v107, %v108
    %v110 = vrot.slane %v109, 1
    %v111 = vmax.f32 %v109, %v110
    %v112 = vsel %vm97, %v90, -inf
    %v113 = vrot.slane %v112, 4
    %v114 = vmax.f32 %v112, %v113
    %v115 = vrot.slane %v114, 2
    %v116 = vmax.f32 %v114, %v115
    %v117 = vrot.slane %v116, 1
    %v118 = vmax.f32 %v116, %v117
    %v119 = vsel %vm97, %v94, -inf
    %v120 = vrot.slane %v119, 4
    %v121 = vmax.f32 %v119, %v120
    %v122 = vrot.slane %v121, 2
    %v123 = vmax.f32 %v121, %v122
    %v124 = vrot.slane %v123, 1
    %v125 = vmax.f32 %v123, %v124
    %v126 = vmax.f32 %v104, 1e-10
    %v127 = vmax.f32 %v111, 1e-10
    %v128 = vmax.f32 %v118, 1e-10
    %v129 = vmax.f32 %v125, 1e-10
    %v134 = vcombine.low %v126, %v127
    %v135 = vcombine.low %v128, %v129
    %v138 = vsub.f32 %v89, %v134
    %v139 = vsub.f32 %v90, %v135
    %v140 = vmul.f32 %v138, 10000.0
    %v141 = vmul.f32 %v139, 10000.0
    %v142 = vmul.f32 %v140, 1.442695
    %v143 = vpow.pop %v142
    %v144 = vmul.f32 %v141, 1.442695
    %v145 = vpow.pop %v144
    %v146 = vmul.f32 %v55, %v143
    %v147 = vmul.f32 %v56, %v145
    %v148 = vsub.f32 1e-10, %v126
    %v149 = vsub.f32 1e-10, %v127
    %v150 = vsub.f32 1e-10, %v128
    %v151 = vsub.f32 1e-10, %v129
    %v152 = vmul.f32 %v148, 10000.0
    %v153 = vmul.f32 %v149, 10000.0
    %v154 = vmul.f32 %v150, 10000.0
    %v155 = vmul.f32 %v151, 10000.0
    %v156 = vmul.f32 %v152, 1.442695
    %v157 = vpow.pop %v156
    %v158 = vmul.f32 %v153, 1.442695
    %v159 = vpow.pop %v158
    %v160 = vmul.f32 %v154, 1.442695
    %v161 = vpow.pop %v160
    %v162 = vmul.f32 %v155, 1.442695
    %v163 = vpow.pop %v162
    %v164 = vmax.f32 %v157, 1e-10
    %v165 = vmax.f32 %v159, 1e-10
    %v166 = vmax.f32 %v161, 1e-10
    %v167 = vmax.f32 %v163, 1e-10
    %v170 = vcombine.high %v146, %v146
    %v171 = vcombine.high %v147, %v147
    %v174 = vsel %vm97, %v146, 0.0
    %v175 = vrot.slane %v174, 4
    %v176 = vadd.f32 %v174, %v175
    %v177 = vrot.slane %v176, 2
    %v178 = vadd.f32 %v176, %v177
    %v179 = vrot.slane %v178, 1
    %v180 = vadd.f32 %v178, %v179
    %v181 = vsel %vm97, %v170, 0.0
    %v182 = vrot.slane %v181, 4
    %v183 = vadd.f32 %v181, %v182
    %v184 = vrot.slane %v183, 2
    %v185 = vadd.f32 %v183, %v184
    %v186 = vrot.slane %v185, 1
    %v187 = vadd.f32 %v185, %v186
    %v188 = vsel %vm97, %v147, 0.0
    %v189 = vrot.slane %v188, 4
    %v190 = vadd.f32 %v188, %v189
    %v191 = vrot.slane %v190, 2
    %v192 = vadd.f32 %v190, %v191
    %v193 = vrot.slane %v192, 1
    %v194 = vadd.f32 %v192, %v193
    %v195 = vsel %vm97, %v171, 0.0
    %v196 = vrot.slane %v195, 4
    %v197 = vadd.f32 %v195, %v196
    %v198 = vrot.slane %v197, 2
    %v199 = vadd.f32 %v197, %v198
    %v200 = vrot.slane %v199, 1
    %v201 = vadd.f32 %v199, %v200
    %v202 = vadd.f32 %v180, %v164
    %v203 = vadd.f32 %v187, %v165
    %v204 = vadd.f32 %v194, %v166
    %v205 = vadd.f32 %v201, %v167
    %v206 = vrcp.pop %v202
    %v207 = vmul.f32 1.0, %v206
    %v208 = vrcp.pop %v203
    %v209 = vmul.f32 1.0, %v208
    %v210 = vrcp.pop %v204
    %v211 = vmul.f32 1.0, %v210
    %v212 = vrcp.pop %v205
    %v213 = vmul.f32 1.0, %v212
    %v214 = vlaneseq
    %v215 = vshrl.u32 %v214, 7
    %v216 = vadd.s32 %v215, 8
    %v217 = vadd.s32 %v215, 16
    %v218 = vlaneseq
    %v219 = vshrl.u32 %v218, 7
    %v220 = vsub.s32 0, %v219
    %v221 = vrot.slane %v21, %v220
    %v222 = vlaneseq
    %v223 = vshrl.u32 %v222, 7
    %v224 = vsub.s32 4, %v223
    %v225 = vrot.slane %v21, %v224
    %v226 = vlaneseq
    %v227 = vshrl.u32 %v226, 7
    %v228 = vsub.s32 0, %v227
    %v229 = vrot.slane %v22, %v228
    %v230 = vlaneseq
    %v231 = vshrl.u32 %v230, 7
    %v232 = vsub.s32 4, %v231
    %v233 = vrot.slane %v22, %v232
    %v234 = vlaneseq
    %v235 = vshrl.u32 %v234, 7
    %v236 = vsub.s32 0, %v235
    %v237 = vrot.slane %v221, %v236
    %v238 = vlaneseq
    %v239 = vshrl.u32 %v238, 7
    %v240 = vsub.s32 0, %v239
    %v241 = vrot.slane %v225, %v240
    %v242 = vlaneseq
    %v243 = vshrl.u32 %v242, 7
    %v244 = vsub.s32 0, %v243
    %v245 = vrot.slane %v229, %v244
    %v246 = vlaneseq
    %v247 = vshrl.u32 %v246, 7
    %v248 = vsub.s32 0, %v247
    %v249 = vrot.slane %v233, %v248
    %vm250 = vcmp.eq.s32.totalorder %v215, %v237
    %vm251 = vcmp.eq.s32.totalorder %v215, %v241
    %vm252 = vcmp.eq.s32.totalorder %v215, %v245
    %vm253 = vcmp.eq.s32.totalorder %v215, %v249
    %vm254 = vcmp.eq.s32.totalorder %v216, %v237
    %vm255 = vcmp.eq.s32.totalorder %v216, %v241
    %vm256 = vcmp.eq.s32.totalorder %v216, %v245
    %vm257 = vcmp.eq.s32.totalorder %v216, %v249
    %vm258 = vcmp.eq.s32.totalorder %v217, %v237
    %vm259 = vcmp.eq.s32.totalorder %v217, %v241
    %vm260 = vcmp.eq.s32.totalorder %v217, %v245
    %vm261 = vcmp.eq.s32.totalorder %v217, %v249
    %v262 = vsel %vm250, 1, 0
    %v263 = vsel %vm251, 1, 0
    %v264 = vsel %vm252, 1, 0
    %v265 = vsel %vm253, 1, 0
    %v266 = vsel %vm254, 1, 0
    %v267 = vsel %vm255, 1, 0
    %v268 = vsel %vm256, 1, 0
    %v269 = vsel %vm257, 1, 0
    %v270 = vsel %vm258, 1, 0
    %v271 = vsel %vm259, 1, 0
    %v272 = vsel %vm260, 1, 0
    %v273 = vsel %vm261, 1, 0
    %v274 = vcvt.s32.f32 %v262
    %v275 = vcvt.s32.f32 %v263
    %v276 = vcvt.s32.f32 %v264
    %v277 = vcvt.s32.f32 %v265
    %v278 = vcvt.s32.f32 %v266
    %v279 = vcvt.s32.f32 %v267
    %v280 = vcvt.s32.f32 %v268
    %v281 = vcvt.s32.f32 %v269
    %v282 = vcvt.s32.f32 %v270
    %v283 = vcvt.s32.f32 %v271
    %v284 = vcvt.s32.f32 %v272
    %v285 = vcvt.s32.f32 %v273
    %v286 = vmul.f32 %v146, %v23
    %v287 = vmul.f32 %v147, %v24
    %v290 = vlaneseq
    %v291 = vshrl.u32 %v290, 7
    %v292 = vsub.s32 0, %v291
    %v293 = vrot.slane %v286, %v292
    %v294 = vlaneseq
    %v295 = vshrl.u32 %v294, 7
    %v296 = vsub.s32 4, %v295
    %v297 = vrot.slane %v286, %v296
    %v298 = vlaneseq
    %v299 = vshrl.u32 %v298, 7
    %v300 = vsub.s32 0, %v299
    %v301 = vrot.slane %v287, %v300
    %v302 = vlaneseq
    %v303 = vshrl.u32 %v302, 7
    %v304 = vsub.s32 4, %v303
    %v305 = vrot.slane %v287, %v304
    %v310 = vlaneseq
    %v311 = vshrl.u32 %v310, 7
    %v312 = vsub.s32 0, %v311
    %v313 = vrot.slane %v293, %v312
    %v314 = vlaneseq
    %v315 = vshrl.u32 %v314, 7
    %v316 = vsub.s32 0, %v315
    %v317 = vrot.slane %v297, %v316
    %v318 = vlaneseq
    %v319 = vshrl.u32 %v318, 7
    %v320 = vsub.s32 0, %v319
    %v321 = vrot.slane %v301, %v320
    %v322 = vlaneseq
    %v323 = vshrl.u32 %v322, 7
    %v324 = vsub.s32 0, %v323
    %v325 = vrot.slane %v305, %v324
    %v326 = vmul.f32 %v274, %v313
    %v327 = vmul.f32 %v275, %v317
    %v328 = vmul.f32 %v276, %v321
    %v329 = vmul.f32 %v277, %v325
    %v330 = vmul.f32 %v278, %v313
    %v331 = vmul.f32 %v279, %v317
    %v332 = vmul.f32 %v280, %v321
    %v333 = vmul.f32 %v281, %v325
    %v334 = vmul.f32 %v282, %v313
    %v335 = vmul.f32 %v283, %v317
    %v336 = vmul.f32 %v284, %v321
    %v337 = vmul.f32 %v285, %v325
    %v340 = vrot.slane %v23, 5
    %v341 = vrot.slane %v340, 4
    %v342 = vrot.slane %v24, 5
    %v343 = vrot.slane %v342, 4
    %v346 = vmul.f32 %v146, %v341
    %v347 = vmul.f32 %v147, %v343
    %v350 = vlaneseq
    %v351 = vshrl.u32 %v350, 7
    %v352 = vsub.s32 0, %v351
    %v353 = vrot.slane %v346, %v352
    %v354 = vlaneseq
    %v355 = vshrl.u32 %v354, 7
    %v356 = vsub.s32 4, %v355
    %v357 = vrot.slane %v346, %v356
    %v358 = vlaneseq
    %v359 = vshrl.u32 %v358, 7
    %v360 = vsub.s32 0, %v359
    %v361 = vrot.slane %v347, %v360
    %v362 = vlaneseq
    %v363 = vshrl.u32 %v362, 7
    %v364 = vsub.s32 4, %v363
    %v365 = vrot.slane %v347, %v364
    %v370 = vlaneseq
    %v371 = vshrl.u32 %v370, 7
    %v372 = vsub.s32 0, %v371
    %v373 = vrot.slane %v353, %v372
    %v374 = vlaneseq
    %v375 = vshrl.u32 %v374, 7
    %v376 = vsub.s32 0, %v375
    %v377 = vrot.slane %v357, %v376
    %v378 = vlaneseq
    %v379 = vshrl.u32 %v378, 7
    %v380 = vsub.s32 0, %v379
    %v381 = vrot.slane %v361, %v380
    %v382 = vlaneseq
    %v383 = vshrl.u32 %v382, 7
    %v384 = vsub.s32 0, %v383
    %v385 = vrot.slane %v365, %v384
    %v386 = vmul.f32 %v274, %v373
    %v387 = vmul.f32 %v275, %v377
    %v388 = vmul.f32 %v276, %v381
    %v389 = vmul.f32 %v277, %v385
    %v390 = vmul.f32 %v278, %v373
    %v391 = vmul.f32 %v279, %v377
    %v392 = vmul.f32 %v280, %v381
    %v393 = vmul.f32 %v281, %v385
    %v394 = vmul.f32 %v282, %v373
    %v395 = vmul.f32 %v283, %v377
    %v396 = vmul.f32 %v284, %v381
    %v397 = vmul.f32 %v285, %v385
    %v398 = vrot.slane %v23, 6
    %v399 = vrot.slane %v398, 4
    %v400 = vrot.slane %v24, 6
    %v401 = vrot.slane %v400, 4
    %v404 = vmul.f32 %v146, %v399
    %v405 = vmul.f32 %v147, %v401
    %v408 = vlaneseq
    %v409 = vshrl.u32 %v408, 7
    %v410 = vsub.s32 0, %v409
    %v411 = vrot.slane %v404, %v410
    %v412 = vlaneseq
    %v413 = vshrl.u32 %v412, 7
    %v414 = vsub.s32 4, %v413
    %v415 = vrot.slane %v404, %v414
    %v416 = vlaneseq
    %v417 = vshrl.u32 %v416, 7
    %v418 = vsub.s32 0, %v417
    %v419 = vrot.slane %v405, %v418
    %v420 = vlaneseq
    %v421 = vshrl.u32 %v420, 7
    %v422 = vsub.s32 4, %v421
    %v423 = vrot.slane %v405, %v422
    %v428 = vlaneseq
    %v429 = vshrl.u32 %v428, 7
    %v430 = vsub.s32 0, %v429
    %v431 = vrot.slane %v411, %v430
    %v432 = vlaneseq
    %v433 = vshrl.u32 %v432, 7
    %v434 = vsub.s32 0, %v433
    %v435 = vrot.slane %v415, %v434
    %v436 = vlaneseq
    %v437 = vshrl.u32 %v436, 7
    %v438 = vsub.s32 0, %v437
    %v439 = vrot.slane %v419, %v438
    %v440 = vlaneseq
    %v441 = vshrl.u32 %v440, 7
    %v442 = vsub.s32 0, %v441
    %v443 = vrot.slane %v423, %v442
    %v444 = vmul.f32 %v274, %v431
    %v445 = vmul.f32 %v275, %v435
    %v446 = vmul.f32 %v276, %v439
    %v447 = vmul.f32 %v277, %v443
    %v448 = vmul.f32 %v278, %v431
    %v449 = vmul.f32 %v279, %v435
    %v450 = vmul.f32 %v280, %v439
    %v451 = vmul.f32 %v281, %v443
    %v452 = vmul.f32 %v282, %v431
    %v453 = vmul.f32 %v283, %v435
    %v454 = vmul.f32 %v284, %v439
    %v455 = vmul.f32 %v285, %v443
    %v456 = vlaneseq
    %v457 = vshrl.u32 %v456, 7
    %v458 = vsub.s32 1, %v457
    %v459 = vrot.slane %v21, %v458
    %v460 = vlaneseq
    %v461 = vshrl.u32 %v460, 7
    %v462 = vsub.s32 5, %v461
    %v463 = vrot.slane %v21, %v462
    %v464 = vlaneseq
    %v465 = vshrl.u32 %v464, 7
    %v466 = vsub.s32 1, %v465
    %v467 = vrot.slane %v22, %v466
    %v468 = vlaneseq
    %v469 = vshrl.u32 %v468, 7
    %v470 = vsub.s32 5, %v469
    %v471 = vrot.slane %v22, %v470
    %v472 = vlaneseq
    %v473 = vshrl.u32 %v472, 7
    %v474 = vsub.s32 1, %v473
    %v475 = vrot.slane %v459, %v474
    %v476 = vlaneseq
    %v477 = vshrl.u32 %v476, 7
    %v478 = vsub.s32 1, %v477
    %v479 = vrot.slane %v463, %v478
    %v480 = vlaneseq
    %v481 = vshrl.u32 %v480, 7
    %v482 = vsub.s32 1, %v481
    %v483 = vrot.slane %v467, %v482
    %v484 = vlaneseq
    %v485 = vshrl.u32 %v484, 7
    %v486 = vsub.s32 1, %v485
    %v487 = vrot.slane %v471, %v486
    %vm488 = vcmp.eq.s32.totalorder %v215, %v475
    %vm489 = vcmp.eq.s32.totalorder %v215, %v479
    %vm490 = vcmp.eq.s32.totalorder %v215, %v483
    %vm491 = vcmp.eq.s32.totalorder %v215, %v487
    %vm492 = vcmp.eq.s32.totalorder %v216, %v475
    %vm493 = vcmp.eq.s32.totalorder %v216, %v479
    %vm494 = vcmp.eq.s32.totalorder %v216, %v483
    %vm495 = vcmp.eq.s32.totalorder %v216, %v487
    %vm496 = vcmp.eq.s32.totalorder %v217, %v475
    %vm497 = vcmp.eq.s32.totalorder %v217, %v479
    %vm498 = vcmp.eq.s32.totalorder %v217, %v483
    %vm499 = vcmp.eq.s32.totalorder %v217, %v487
    %v500 = vsel %vm488, 1, 0
    %v501 = vsel %vm489, 1, 0
    %v502 = vsel %vm490, 1, 0
    %v503 = vsel %vm491, 1, 0
    %v504 = vsel %vm492, 1, 0
    %v505 = vsel %vm493, 1, 0
    %v506 = vsel %vm494, 1, 0
    %v507 = vsel %vm495, 1, 0
    %v508 = vsel %vm496, 1, 0
    %v509 = vsel %vm497, 1, 0
    %v510 = vsel %vm498, 1, 0
    %v511 = vsel %vm499, 1, 0
    %v512 = vcvt.s32.f32 %v500
    %v513 = vcvt.s32.f32 %v501
    %v514 = vcvt.s32.f32 %v502
    %v515 = vcvt.s32.f32 %v503
    %v516 = vcvt.s32.f32 %v504
    %v517 = vcvt.s32.f32 %v505
    %v518 = vcvt.s32.f32 %v506
    %v519 = vcvt.s32.f32 %v507
    %v520 = vcvt.s32.f32 %v508
    %v521 = vcvt.s32.f32 %v509
    %v522 = vcvt.s32.f32 %v510
    %v523 = vcvt.s32.f32 %v511
    %v526 = vrot.slane %v25, 7
    %v527 = vrot.slane %v26, 7
    %v530 = vmul.f32 %v146, %v526
    %v531 = vmul.f32 %v147, %v527
    %v534 = vlaneseq
    %v535 = vshrl.u32 %v534, 7
    %v536 = vsub.s32 1, %v535
    %v537 = vrot.slane %v530, %v536
    %v538 = vlaneseq
    %v539 = vshrl.u32 %v538, 7
    %v540 = vsub.s32 5, %v539
    %v541 = vrot.slane %v530, %v540
    %v542 = vlaneseq
    %v543 = vshrl.u32 %v542, 7
    %v544 = vsub.s32 1, %v543
    %v545 = vrot.slane %v531, %v544
    %v546 = vlaneseq
    %v547 = vshrl.u32 %v546, 7
    %v548 = vsub.s32 5, %v547
    %v549 = vrot.slane %v531, %v548
    %v554 = vlaneseq
    %v555 = vshrl.u32 %v554, 7
    %v556 = vsub.s32 1, %v555
    %v557 = vrot.slane %v537, %v556
    %v558 = vlaneseq
    %v559 = vshrl.u32 %v558, 7
    %v560 = vsub.s32 1, %v559
    %v561 = vrot.slane %v541, %v560
    %v562 = vlaneseq
    %v563 = vshrl.u32 %v562, 7
    %v564 = vsub.s32 1, %v563
    %v565 = vrot.slane %v545, %v564
    %v566 = vlaneseq
    %v567 = vshrl.u32 %v566, 7
    %v568 = vsub.s32 1, %v567
    %v569 = vrot.slane %v549, %v568
    %v570 = vmul.f32 %v512, %v557
    %v571 = vmul.f32 %v513, %v561
    %v572 = vmul.f32 %v514, %v565
    %v573 = vmul.f32 %v515, %v569
    %v574 = vmul.f32 %v516, %v557
    %v575 = vmul.f32 %v517, %v561
    %v576 = vmul.f32 %v518, %v565
    %v577 = vmul.f32 %v519, %v569
    %v578 = vmul.f32 %v520, %v557
    %v579 = vmul.f32 %v521, %v561
    %v580 = vmul.f32 %v522, %v565
    %v581 = vmul.f32 %v523, %v569
    %v582 = vadd.f32 %v326, %v570
    %v583 = vadd.f32 %v327, %v571
    %v584 = vadd.f32 %v328, %v572
    %v585 = vadd.f32 %v329, %v573
    %v586 = vadd.f32 %v330, %v574
    %v587 = vadd.f32 %v331, %v575
    %v588 = vadd.f32 %v332, %v576
    %v589 = vadd.f32 %v333, %v577
    %v590 = vadd.f32 %v334, %v578
    %v591 = vadd.f32 %v335, %v579
    %v592 = vadd.f32 %v336, %v580
    %v593 = vadd.f32 %v337, %v581
    %v594 = vmul.f32 %v146, %v25
    %v595 = vmul.f32 %v147, %v26
    %v598 = vlaneseq
    %v599 = vshrl.u32 %v598, 7
    %v600 = vsub.s32 1, %v599
    %v601 = vrot.slane %v594, %v600
    %v602 = vlaneseq
    %v603 = vshrl.u32 %v602, 7
    %v604 = vsub.s32 5, %v603
    %v605 = vrot.slane %v594, %v604
    %v606 = vlaneseq
    %v607 = vshrl.u32 %v606, 7
    %v608 = vsub.s32 1, %v607
    %v609 = vrot.slane %v595, %v608
    %v610 = vlaneseq
    %v611 = vshrl.u32 %v610, 7
    %v612 = vsub.s32 5, %v611
    %v613 = vrot.slane %v595, %v612
    %v618 = vlaneseq
    %v619 = vshrl.u32 %v618, 7
    %v620 = vsub.s32 1, %v619
    %v621 = vrot.slane %v601, %v620
    %v622 = vlaneseq
    %v623 = vshrl.u32 %v622, 7
    %v624 = vsub.s32 1, %v623
    %v625 = vrot.slane %v605, %v624
    %v626 = vlaneseq
    %v627 = vshrl.u32 %v626, 7
    %v628 = vsub.s32 1, %v627
    %v629 = vrot.slane %v609, %v628
    %v630 = vlaneseq
    %v631 = vshrl.u32 %v630, 7
    %v632 = vsub.s32 1, %v631
    %v633 = vrot.slane %v613, %v632
    %v634 = vmul.f32 %v512, %v621
    %v635 = vmul.f32 %v513, %v625
    %v636 = vmul.f32 %v514, %v629
    %v637 = vmul.f32 %v515, %v633
    %v638 = vmul.f32 %v516, %v621
    %v639 = vmul.f32 %v517, %v625
    %v640 = vmul.f32 %v518, %v629
    %v641 = vmul.f32 %v519, %v633
    %v642 = vmul.f32 %v520, %v621
    %v643 = vmul.f32 %v521, %v625
    %v644 = vmul.f32 %v522, %v629
    %v645 = vmul.f32 %v523, %v633
    %v646 = vadd.f32 %v386, %v634
    %v647 = vadd.f32 %v387, %v635
    %v648 = vadd.f32 %v388, %v636
    %v649 = vadd.f32 %v389, %v637
    %v650 = vadd.f32 %v390, %v638
    %v651 = vadd.f32 %v391, %v639
    %v652 = vadd.f32 %v392, %v640
    %v653 = vadd.f32 %v393, %v641
    %v654 = vadd.f32 %v394, %v642
    %v655 = vadd.f32 %v395, %v643
    %v656 = vadd.f32 %v396, %v644
    %v657 = vadd.f32 %v397, %v645
    %v658 = vrot.slane %v25, 5
    %v659 = vrot.slane %v658, 4
    %v660 = vrot.slane %v26, 5
    %v661 = vrot.slane %v660, 4
    %v664 = vmul.f32 %v146, %v659
    %v665 = vmul.f32 %v147, %v661
    %v668 = vlaneseq
    %v669 = vshrl.u32 %v668, 7
    %v670 = vsub.s32 1, %v669
    %v671 = vrot.slane %v664, %v670
    %v672 = vlaneseq
    %v673 = vshrl.u32 %v672, 7
    %v674 = vsub.s32 5, %v673
    %v675 = vrot.slane %v664, %v674
    %v676 = vlaneseq
    %v677 = vshrl.u32 %v676, 7
    %v678 = vsub.s32 1, %v677
    %v679 = vrot.slane %v665, %v678
    %v680 = vlaneseq
    %v681 = vshrl.u32 %v680, 7
    %v682 = vsub.s32 5, %v681
    %v683 = vrot.slane %v665, %v682
    %v688 = vlaneseq
    %v689 = vshrl.u32 %v688, 7
    %v690 = vsub.s32 1, %v689
    %v691 = vrot.slane %v671, %v690
    %v692 = vlaneseq
    %v693 = vshrl.u32 %v692, 7
    %v694 = vsub.s32 1, %v693
    %v695 = vrot.slane %v675, %v694
    %v696 = vlaneseq
    %v697 = vshrl.u32 %v696, 7
    %v698 = vsub.s32 1, %v697
    %v699 = vrot.slane %v679, %v698
    %v700 = vlaneseq
    %v701 = vshrl.u32 %v700, 7
    %v702 = vsub.s32 1, %v701
    %v703 = vrot.slane %v683, %v702
    %v704 = vmul.f32 %v512, %v691
    %v705 = vmul.f32 %v513, %v695
    %v706 = vmul.f32 %v514, %v699
    %v707 = vmul.f32 %v515, %v703
    %v708 = vmul.f32 %v516, %v691
    %v709 = vmul.f32 %v517, %v695
    %v710 = vmul.f32 %v518, %v699
    %v711 = vmul.f32 %v519, %v703
    %v712 = vmul.f32 %v520, %v691
    %v713 = vmul.f32 %v521, %v695
    %v714 = vmul.f32 %v522, %v699
    %v715 = vmul.f32 %v523, %v703
    %v716 = vadd.f32 %v444, %v704
    %v717 = vadd.f32 %v445, %v705
    %v718 = vadd.f32 %v446, %v706
    %v719 = vadd.f32 %v447, %v707
    %v720 = vadd.f32 %v448, %v708
    %v721 = vadd.f32 %v449, %v709
    %v722 = vadd.f32 %v450, %v710
    %v723 = vadd.f32 %v451, %v711
    %v724 = vadd.f32 %v452, %v712
    %v725 = vadd.f32 %v453, %v713
    %v726 = vadd.f32 %v454, %v714
    %v727 = vadd.f32 %v455, %v715
    %v728 = vlaneseq
    %v729 = vshrl.u32 %v728, 7
    %v730 = vsub.s32 2, %v729
    %v731 = vrot.slane %v21, %v730
    %v732 = vlaneseq
    %v733 = vshrl.u32 %v732, 7
    %v734 = vsub.s32 6, %v733
    %v735 = vrot.slane %v21, %v734
    %v736 = vlaneseq
    %v737 = vshrl.u32 %v736, 7
    %v738 = vsub.s32 2, %v737
    %v739 = vrot.slane %v22, %v738
    %v740 = vlaneseq
    %v741 = vshrl.u32 %v740, 7
    %v742 = vsub.s32 6, %v741
    %v743 = vrot.slane %v22, %v742
    %v744 = vlaneseq
    %v745 = vshrl.u32 %v744, 7
    %v746 = vsub.s32 2, %v745
    %v747 = vrot.slane %v731, %v746
    %v748 = vlaneseq
    %v749 = vshrl.u32 %v748, 7
    %v750 = vsub.s32 2, %v749
    %v751 = vrot.slane %v735, %v750
    %v752 = vlaneseq
    %v753 = vshrl.u32 %v752, 7
    %v754 = vsub.s32 2, %v753
    %v755 = vrot.slane %v739, %v754
    %v756 = vlaneseq
    %v757 = vshrl.u32 %v756, 7
    %v758 = vsub.s32 2, %v757
    %v759 = vrot.slane %v743, %v758
    %vm760 = vcmp.eq.s32.totalorder %v215, %v747
    %vm761 = vcmp.eq.s32.totalorder %v215, %v751
    %vm762 = vcmp.eq.s32.totalorder %v215, %v755
    %vm763 = vcmp.eq.s32.totalorder %v215, %v759
    %vm764 = vcmp.eq.s32.totalorder %v216, %v747
    %vm765 = vcmp.eq.s32.totalorder %v216, %v751
    %vm766 = vcmp.eq.s32.totalorder %v216, %v755
    %vm767 = vcmp.eq.s32.totalorder %v216, %v759
    %vm768 = vcmp.eq.s32.totalorder %v217, %v747
    %vm769 = vcmp.eq.s32.totalorder %v217, %v751
    %vm770 = vcmp.eq.s32.totalorder %v217, %v755
    %vm771 = vcmp.eq.s32.totalorder %v217, %v759
    %v772 = vsel %vm760, 1, 0
    %v773 = vsel %vm761, 1, 0
    %v774 = vsel %vm762, 1, 0
    %v775 = vsel %vm763, 1, 0
    %v776 = vsel %vm764, 1, 0
    %v777 = vsel %vm765, 1, 0
    %v778 = vsel %vm766, 1, 0
    %v779 = vsel %vm767, 1, 0
    %v780 = vsel %vm768, 1, 0
    %v781 = vsel %vm769, 1, 0
    %v782 = vsel %vm770, 1, 0
    %v783 = vsel %vm771, 1, 0
    %v784 = vcvt.s32.f32 %v772
    %v785 = vcvt.s32.f32 %v773
    %v786 = vcvt.s32.f32 %v774
    %v787 = vcvt.s32.f32 %v775
    %v788 = vcvt.s32.f32 %v776
    %v789 = vcvt.s32.f32 %v777
    %v790 = vcvt.s32.f32 %v778
    %v791 = vcvt.s32.f32 %v779
    %v792 = vcvt.s32.f32 %v780
    %v793 = vcvt.s32.f32 %v781
    %v794 = vcvt.s32.f32 %v782
    %v795 = vcvt.s32.f32 %v783
    %v798 = vrot.slane %v27, 6
    %v799 = vrot.slane %v28, 6
    %v802 = vmul.f32 %v146, %v798
    %v803 = vmul.f32 %v147, %v799
    %v806 = vlaneseq
    %v807 = vshrl.u32 %v806, 7
    %v808 = vsub.s32 2, %v807
    %v809 = vrot.slane %v802, %v808
    %v810 = vlaneseq
    %v811 = vshrl.u32 %v810, 7
    %v812 = vsub.s32 6, %v811
    %v813 = vrot.slane %v802, %v812
    %v814 = vlaneseq
    %v815 = vshrl.u32 %v814, 7
    %v816 = vsub.s32 2, %v815
    %v817 = vrot.slane %v803, %v816
    %v818 = vlaneseq
    %v819 = vshrl.u32 %v818, 7
    %v820 = vsub.s32 6, %v819
    %v821 = vrot.slane %v803, %v820
    %v826 = vlaneseq
    %v827 = vshrl.u32 %v826, 7
    %v828 = vsub.s32 2, %v827
    %v829 = vrot.slane %v809, %v828
    %v830 = vlaneseq
    %v831 = vshrl.u32 %v830, 7
    %v832 = vsub.s32 2, %v831
    %v833 = vrot.slane %v813, %v832
    %v834 = vlaneseq
    %v835 = vshrl.u32 %v834, 7
    %v836 = vsub.s32 2, %v835
    %v837 = vrot.slane %v817, %v836
    %v838 = vlaneseq
    %v839 = vshrl.u32 %v838, 7
    %v840 = vsub.s32 2, %v839
    %v841 = vrot.slane %v821, %v840
    %v842 = vmul.f32 %v784, %v829
    %v843 = vmul.f32 %v785, %v833
    %v844 = vmul.f32 %v786, %v837
    %v845 = vmul.f32 %v787, %v841
    %v846 = vmul.f32 %v788, %v829
    %v847 = vmul.f32 %v789, %v833
    %v848 = vmul.f32 %v790, %v837
    %v849 = vmul.f32 %v791, %v841
    %v850 = vmul.f32 %v792, %v829
    %v851 = vmul.f32 %v793, %v833
    %v852 = vmul.f32 %v794, %v837
    %v853 = vmul.f32 %v795, %v841
    %v854 = vadd.f32 %v582, %v842
    %v855 = vadd.f32 %v583, %v843
    %v856 = vadd.f32 %v584, %v844
    %v857 = vadd.f32 %v585, %v845
    %v858 = vadd.f32 %v586, %v846
    %v859 = vadd.f32 %v587, %v847
    %v860 = vadd.f32 %v588, %v848
    %v861 = vadd.f32 %v589, %v849
    %v862 = vadd.f32 %v590, %v850
    %v863 = vadd.f32 %v591, %v851
    %v864 = vadd.f32 %v592, %v852
    %v865 = vadd.f32 %v593, %v853
    %v866 = vrot.slane %v27, 7
    %v867 = vrot.slane %v28, 7
    %v870 = vmul.f32 %v146, %v866
    %v871 = vmul.f32 %v147, %v867
    %v874 = vlaneseq
    %v875 = vshrl.u32 %v874, 7
    %v876 = vsub.s32 2, %v875
    %v877 = vrot.slane %v870, %v876
    %v878 = vlaneseq
    %v879 = vshrl.u32 %v878, 7
    %v880 = vsub.s32 6, %v879
    %v881 = vrot.slane %v870, %v880
    %v882 = vlaneseq
    %v883 = vshrl.u32 %v882, 7
    %v884 = vsub.s32 2, %v883
    %v885 = vrot.slane %v871, %v884
    %v886 = vlaneseq
    %v887 = vshrl.u32 %v886, 7
    %v888 = vsub.s32 6, %v887
    %v889 = vrot.slane %v871, %v888
    %v894 = vlaneseq
    %v895 = vshrl.u32 %v894, 7
    %v896 = vsub.s32 2, %v895
    %v897 = vrot.slane %v877, %v896
    %v898 = vlaneseq
    %v899 = vshrl.u32 %v898, 7
    %v900 = vsub.s32 2, %v899
    %v901 = vrot.slane %v881, %v900
    %v902 = vlaneseq
    %v903 = vshrl.u32 %v902, 7
    %v904 = vsub.s32 2, %v903
    %v905 = vrot.slane %v885, %v904
    %v906 = vlaneseq
    %v907 = vshrl.u32 %v906, 7
    %v908 = vsub.s32 2, %v907
    %v909 = vrot.slane %v889, %v908
    %v910 = vmul.f32 %v784, %v897
    %v911 = vmul.f32 %v785, %v901
    %v912 = vmul.f32 %v786, %v905
    %v913 = vmul.f32 %v787, %v909
    %v914 = vmul.f32 %v788, %v897
    %v915 = vmul.f32 %v789, %v901
    %v916 = vmul.f32 %v790, %v905
    %v917 = vmul.f32 %v791, %v909
    %v918 = vmul.f32 %v792, %v897
    %v919 = vmul.f32 %v793, %v901
    %v920 = vmul.f32 %v794, %v905
    %v921 = vmul.f32 %v795, %v909
    %v922 = vadd.f32 %v646, %v910
    %v923 = vadd.f32 %v647, %v911
    %v924 = vadd.f32 %v648, %v912
    %v925 = vadd.f32 %v649, %v913
    %v926 = vadd.f32 %v650, %v914
    %v927 = vadd.f32 %v651, %v915
    %v928 = vadd.f32 %v652, %v916
    %v929 = vadd.f32 %v653, %v917
    %v930 = vadd.f32 %v654, %v918
    %v931 = vadd.f32 %v655, %v919
    %v932 = vadd.f32 %v656, %v920
    %v933 = vadd.f32 %v657, %v921
    %v934 = vmul.f32 %v146, %v27
    %v935 = vmul.f32 %v147, %v28
    %v938 = vlaneseq
    %v939 = vshrl.u32 %v938, 7
    %v940 = vsub.s32 2, %v939
    %v941 = vrot.slane %v934, %v940
    %v942 = vlaneseq
    %v943 = vshrl.u32 %v942, 7
    %v944 = vsub.s32 6, %v943
    %v945 = vrot.slane %v934, %v944
    %v946 = vlaneseq
    %v947 = vshrl.u32 %v946, 7
    %v948 = vsub.s32 2, %v947
    %v949 = vrot.slane %v935, %v948
    %v950 = vlaneseq
    %v951 = vshrl.u32 %v950, 7
    %v952 = vsub.s32 6, %v951
    %v953 = vrot.slane %v935, %v952
    %v958 = vlaneseq
    %v959 = vshrl.u32 %v958, 7
    %v960 = vsub.s32 2, %v959
    %v961 = vrot.slane %v941, %v960
    %v962 = vlaneseq
    %v963 = vshrl.u32 %v962, 7
    %v964 = vsub.s32 2, %v963
    %v965 = vrot.slane %v945, %v964
    %v966 = vlaneseq
    %v967 = vshrl.u32 %v966, 7
    %v968 = vsub.s32 2, %v967
    %v969 = vrot.slane %v949, %v968
    %v970 = vlaneseq
    %v971 = vshrl.u32 %v970, 7
    %v972 = vsub.s32 2, %v971
    %v973 = vrot.slane %v953, %v972
    %v974 = vmul.f32 %v784, %v961
    %v975 = vmul.f32 %v785, %v965
    %v976 = vmul.f32 %v786, %v969
    %v977 = vmul.f32 %v787, %v973
    %v978 = vmul.f32 %v788, %v961
    %v979 = vmul.f32 %v789, %v965
    %v980 = vmul.f32 %v790, %v969
    %v981 = vmul.f32 %v791, %v973
    %v982 = vmul.f32 %v792, %v961
    %v983 = vmul.f32 %v793, %v965
    %v984 = vmul.f32 %v794, %v969
    %v985 = vmul.f32 %v795, %v973
    %v986 = vadd.f32 %v716, %v974
    %v987 = vadd.f32 %v717, %v975
    %v988 = vadd.f32 %v718, %v976
    %v989 = vadd.f32 %v719, %v977
    %v990 = vadd.f32 %v720, %v978
    %v991 = vadd.f32 %v721, %v979
    %v992 = vadd.f32 %v722, %v980
    %v993 = vadd.f32 %v723, %v981
    %v994 = vadd.f32 %v724, %v982
    %v995 = vadd.f32 %v725, %v983
    %v996 = vadd.f32 %v726, %v984
    %v997 = vadd.f32 %v727, %v985
    %v998 = vlaneseq
    %v999 = vshrl.u32 %v998, 7
    %v1000 = vsub.s32 3, %v999
    %v1001 = vrot.slane %v21, %v1000
    %v1002 = vlaneseq
    %v1003 = vshrl.u32 %v1002, 7
    %v1004 = vsub.s32 7, %v1003
    %v1005 = vrot.slane %v21, %v1004
    %v1006 = vlaneseq
    %v1007 = vshrl.u32 %v1006, 7
    %v1008 = vsub.s32 3, %v1007
    %v1009 = vrot.slane %v22, %v1008
    %v1010 = vlaneseq
    %v1011 = vshrl.u32 %v1010, 7
    %v1012 = vsub.s32 7, %v1011
    %v1013 = vrot.slane %v22, %v1012
    %v1014 = vlaneseq
    %v1015 = vshrl.u32 %v1014, 7
    %v1016 = vsub.s32 3, %v1015
    %v1017 = vrot.slane %v1001, %v1016
    %v1018 = vlaneseq
    %v1019 = vshrl.u32 %v1018, 7
    %v1020 = vsub.s32 3, %v1019
    %v1021 = vrot.slane %v1005, %v1020
    %v1022 = vlaneseq
    %v1023 = vshrl.u32 %v1022, 7
    %v1024 = vsub.s32 3, %v1023
    %v1025 = vrot.slane %v1009, %v1024
    %v1026 = vlaneseq
    %v1027 = vshrl.u32 %v1026, 7
    %v1028 = vsub.s32 3, %v1027
    %v1029 = vrot.slane %v1013, %v1028
    %vm1030 = vcmp.eq.s32.totalorder %v215, %v1017
    %vm1031 = vcmp.eq.s32.totalorder %v215, %v1021
    %vm1032 = vcmp.eq.s32.totalorder %v215, %v1025
    %vm1033 = vcmp.eq.s32.totalorder %v215, %v1029
    %vm1034 = vcmp.eq.s32.totalorder %v216, %v1017
    %vm1035 = vcmp.eq.s32.totalorder %v216, %v1021
    %vm1036 = vcmp.eq.s32.totalorder %v216, %v1025
    %vm1037 = vcmp.eq.s32.totalorder %v216, %v1029
    %vm1038 = vcmp.eq.s32.totalorder %v217, %v1017
    %vm1039 = vcmp.eq.s32.totalorder %v217, %v1021
    %vm1040 = vcmp.eq.s32.totalorder %v217, %v1025
    %vm1041 = vcmp.eq.s32.totalorder %v217, %v1029
    %v1042 = vsel %vm1030, 1, 0
    %v1043 = vsel %vm1031, 1, 0
    %v1044 = vsel %vm1032, 1, 0
    %v1045 = vsel %vm1033, 1, 0
    %v1046 = vsel %vm1034, 1, 0
    %v1047 = vsel %vm1035, 1, 0
    %v1048 = vsel %vm1036, 1, 0
    %v1049 = vsel %vm1037, 1, 0
    %v1050 = vsel %vm1038, 1, 0
    %v1051 = vsel %vm1039, 1, 0
    %v1052 = vsel %vm1040, 1, 0
    %v1053 = vsel %vm1041, 1, 0
    %v1054 = vcvt.s32.f32 %v1042
    %v1055 = vcvt.s32.f32 %v1043
    %v1056 = vcvt.s32.f32 %v1044
    %v1057 = vcvt.s32.f32 %v1045
    %v1058 = vcvt.s32.f32 %v1046
    %v1059 = vcvt.s32.f32 %v1047
    %v1060 = vcvt.s32.f32 %v1048
    %v1061 = vcvt.s32.f32 %v1049
    %v1062 = vcvt.s32.f32 %v1050
    %v1063 = vcvt.s32.f32 %v1051
    %v1064 = vcvt.s32.f32 %v1052
    %v1065 = vcvt.s32.f32 %v1053
    %v1068 = vrot.slane %v29, 5
    %v1069 = vrot.slane %v30, 5
    %v1072 = vmul.f32 %v146, %v1068
    %v1073 = vmul.f32 %v147, %v1069
    %v1076 = vlaneseq
    %v1077 = vshrl.u32 %v1076, 7
    %v1078 = vsub.s32 3, %v1077
    %v1079 = vrot.slane %v1072, %v1078
    %v1080 = vlaneseq
    %v1081 = vshrl.u32 %v1080, 7
    %v1082 = vsub.s32 7, %v1081
    %v1083 = vrot.slane %v1072, %v1082
    %v1084 = vlaneseq
    %v1085 = vshrl.u32 %v1084, 7
    %v1086 = vsub.s32 3, %v1085
    %v1087 = vrot.slane %v1073, %v1086
    %v1088 = vlaneseq
    %v1089 = vshrl.u32 %v1088, 7
    %v1090 = vsub.s32 7, %v1089
    %v1091 = vrot.slane %v1073, %v1090
    %v1096 = vlaneseq
    %v1097 = vshrl.u32 %v1096, 7
    %v1098 = vsub.s32 3, %v1097
    %v1099 = vrot.slane %v1079, %v1098
    %v1100 = vlaneseq
    %v1101 = vshrl.u32 %v1100, 7
    %v1102 = vsub.s32 3, %v1101
    %v1103 = vrot.slane %v1083, %v1102
    %v1104 = vlaneseq
    %v1105 = vshrl.u32 %v1104, 7
    %v1106 = vsub.s32 3, %v1105
    %v1107 = vrot.slane %v1087, %v1106
    %v1108 = vlaneseq
    %v1109 = vshrl.u32 %v1108, 7
    %v1110 = vsub.s32 3, %v1109
    %v1111 = vrot.slane %v1091, %v1110
    %v1112 = vmul.f32 %v1054, %v1099
    %v1113 = vmul.f32 %v1055, %v1103
    %v1114 = vmul.f32 %v1056, %v1107
    %v1115 = vmul.f32 %v1057, %v1111
    %v1116 = vmul.f32 %v1058, %v1099
    %v1117 = vmul.f32 %v1059, %v1103
    %v1118 = vmul.f32 %v1060, %v1107
    %v1119 = vmul.f32 %v1061, %v1111
    %v1120 = vmul.f32 %v1062, %v1099
    %v1121 = vmul.f32 %v1063, %v1103
    %v1122 = vmul.f32 %v1064, %v1107
    %v1123 = vmul.f32 %v1065, %v1111
    %v1124 = vadd.f32 %v854, %v1112
    %v1125 = vadd.f32 %v855, %v1113
    %v1126 = vadd.f32 %v856, %v1114
    %v1127 = vadd.f32 %v857, %v1115
    %v1128 = vadd.f32 %v858, %v1116
    %v1129 = vadd.f32 %v859, %v1117
    %v1130 = vadd.f32 %v860, %v1118
    %v1131 = vadd.f32 %v861, %v1119
    %v1132 = vadd.f32 %v862, %v1120
    %v1133 = vadd.f32 %v863, %v1121
    %v1134 = vadd.f32 %v864, %v1122
    %v1135 = vadd.f32 %v865, %v1123
    %v1136 = vrot.slane %v29, 6
    %v1137 = vrot.slane %v30, 6
    %v1140 = vmul.f32 %v146, %v1136
    %v1141 = vmul.f32 %v147, %v1137
    %v1144 = vlaneseq
    %v1145 = vshrl.u32 %v1144, 7
    %v1146 = vsub.s32 3, %v1145
    %v1147 = vrot.slane %v1140, %v1146
    %v1148 = vlaneseq
    %v1149 = vshrl.u32 %v1148, 7
    %v1150 = vsub.s32 7, %v1149
    %v1151 = vrot.slane %v1140, %v1150
    %v1152 = vlaneseq
    %v1153 = vshrl.u32 %v1152, 7
    %v1154 = vsub.s32 3, %v1153
    %v1155 = vrot.slane %v1141, %v1154
    %v1156 = vlaneseq
    %v1157 = vshrl.u32 %v1156, 7
    %v1158 = vsub.s32 7, %v1157
    %v1159 = vrot.slane %v1141, %v1158
    %v1164 = vlaneseq
    %v1165 = vshrl.u32 %v1164, 7
    %v1166 = vsub.s32 3, %v1165
    %v1167 = vrot.slane %v1147, %v1166
    %v1168 = vlaneseq
    %v1169 = vshrl.u32 %v1168, 7
    %v1170 = vsub.s32 3, %v1169
    %v1171 = vrot.slane %v1151, %v1170
    %v1172 = vlaneseq
    %v1173 = vshrl.u32 %v1172, 7
    %v1174 = vsub.s32 3, %v1173
    %v1175 = vrot.slane %v1155, %v1174
    %v1176 = vlaneseq
    %v1177 = vshrl.u32 %v1176, 7
    %v1178 = vsub.s32 3, %v1177
    %v1179 = vrot.slane %v1159, %v1178
    %v1180 = vmul.f32 %v1054, %v1167
    %v1181 = vmul.f32 %v1055, %v1171
    %v1182 = vmul.f32 %v1056, %v1175
    %v1183 = vmul.f32 %v1057, %v1179
    %v1184 = vmul.f32 %v1058, %v1167
    %v1185 = vmul.f32 %v1059, %v1171
    %v1186 = vmul.f32 %v1060, %v1175
    %v1187 = vmul.f32 %v1061, %v1179
    %v1188 = vmul.f32 %v1062, %v1167
    %v1189 = vmul.f32 %v1063, %v1171
    %v1190 = vmul.f32 %v1064, %v1175
    %v1191 = vmul.f32 %v1065, %v1179
    %v1192 = vadd.f32 %v922, %v1180
    %v1193 = vadd.f32 %v923, %v1181
    %v1194 = vadd.f32 %v924, %v1182
    %v1195 = vadd.f32 %v925, %v1183
    %v1196 = vadd.f32 %v926, %v1184
    %v1197 = vadd.f32 %v927, %v1185
    %v1198 = vadd.f32 %v928, %v1186
    %v1199 = vadd.f32 %v929, %v1187
    %v1200 = vadd.f32 %v930, %v1188
    %v1201 = vadd.f32 %v931, %v1189
    %v1202 = vadd.f32 %v932, %v1190
    %v1203 = vadd.f32 %v933, %v1191
    %v1204 = vrot.slane %v29, 7
    %v1205 = vrot.slane %v30, 7
    %v1208 = vmul.f32 %v146, %v1204
    %v1209 = vmul.f32 %v147, %v1205
    %v1212 = vlaneseq
    %v1213 = vshrl.u32 %v1212, 7
    %v1214 = vsub.s32 3, %v1213
    %v1215 = vrot.slane %v1208, %v1214
    %v1216 = vlaneseq
    %v1217 = vshrl.u32 %v1216, 7
    %v1218 = vsub.s32 7, %v1217
    %v1219 = vrot.slane %v1208, %v1218
    %v1220 = vlaneseq
    %v1221 = vshrl.u32 %v1220, 7
    %v1222 = vsub.s32 3, %v1221
    %v1223 = vrot.slane %v1209, %v1222
    %v1224 = vlaneseq
    %v1225 = vshrl.u32 %v1224, 7
    %v1226 = vsub.s32 7, %v1225
    %v1227 = vrot.slane %v1209, %v1226
    %v1232 = vlaneseq
    %v1233 = vshrl.u32 %v1232, 7
    %v1234 = vsub.s32 3, %v1233
    %v1235 = vrot.slane %v1215, %v1234
    %v1236 = vlaneseq
    %v1237 = vshrl.u32 %v1236, 7
    %v1238 = vsub.s32 3, %v1237
    %v1239 = vrot.slane %v1219, %v1238
    %v1240 = vlaneseq
    %v1241 = vshrl.u32 %v1240, 7
    %v1242 = vsub.s32 3, %v1241
    %v1243 = vrot.slane %v1223, %v1242
    %v1244 = vlaneseq
    %v1245 = vshrl.u32 %v1244, 7
    %v1246 = vsub.s32 3, %v1245
    %v1247 = vrot.slane %v1227, %v1246
    %v1248 = vmul.f32 %v1054, %v1235
    %v1249 = vmul.f32 %v1055, %v1239
    %v1250 = vmul.f32 %v1056, %v1243
    %v1251 = vmul.f32 %v1057, %v1247
    %v1252 = vmul.f32 %v1058, %v1235
    %v1253 = vmul.f32 %v1059, %v1239
    %v1254 = vmul.f32 %v1060, %v1243
    %v1255 = vmul.f32 %v1061, %v1247
    %v1256 = vmul.f32 %v1062, %v1235
    %v1257 = vmul.f32 %v1063, %v1239
    %v1258 = vmul.f32 %v1064, %v1243
    %v1259 = vmul.f32 %v1065, %v1247
    %v1260 = vadd.f32 %v986, %v1248
    %v1261 = vadd.f32 %v987, %v1249
    %v1262 = vadd.f32 %v988, %v1250
    %v1263 = vadd.f32 %v989, %v1251
    %v1264 = vadd.f32 %v990, %v1252
    %v1265 = vadd.f32 %v991, %v1253
    %v1266 = vadd.f32 %v992, %v1254
    %v1267 = vadd.f32 %v993, %v1255
    %v1268 = vadd.f32 %v994, %v1256
    %v1269 = vadd.f32 %v995, %v1257
    %v1270 = vadd.f32 %v996, %v1258
    %v1271 = vadd.f32 %v997, %v1259
    %v1272 = vld [vmem:[%s4] sm:$0x7]
    %vm1273 = vcmask 588800
    %v1275 = vsel %vm1273, %v1272, 0
    %v1277 = vand.u32 %v1125, 4294901760
    %1278 = vmatprep.subr.mxu0 %v1277
    %v1279 = vand.u32 %v1124, 4294901760
    %1280 = vmatpush1.msra.mxu0 %v1279
    %v1281 = vand.u32 %v1129, 4294901760
    %1282 = vmatprep.subr.mxu0 %v1281
    %v1283 = vand.u32 %v1128, 4294901760
    %1284 = vmatpush1.msra.mxu0 %v1283
    %v1285 = vand.u32 %v1133, 4294901760
    %1286 = vmatprep.subr.mxu0 %v1285
    %v1287 = vand.u32 %v1132, 4294901760
    %1288 = vmatpush1.msra.mxu0 %v1287
    %v1289 = vand.u32 %v1193, 4294901760
    %1290 = vmatprep.subr.mxu0 %v1289
    %v1291 = vand.u32 %v1192, 4294901760
    %1292 = vmatpush1.msra.mxu0 %v1291
    %v1293 = vand.u32 %v1197, 4294901760
    %1294 = vmatprep.subr.mxu0 %v1293
    %v1295 = vand.u32 %v1196, 4294901760
    %1296 = vmatpush1.msra.mxu0 %v1295
    %v1297 = vand.u32 %v1201, 4294901760
    %1298 = vmatprep.subr.mxu0 %v1297
    %v1299 = vand.u32 %v1200, 4294901760
    %1300 = vmatpush1.msra.mxu0 %v1299
    %v1301 = vand.u32 %v1261, 4294901760
    %1302 = vmatprep.subr.mxu0 %v1301
    %v1303 = vand.u32 %v1260, 4294901760
    %1304 = vmatpush1.msra.mxu0 %v1303
    %v1305 = vand.u32 %v1265, 4294901760
    %1306 = vmatprep.subr.mxu0 %v1305
    %v1307 = vand.u32 %v1264, 4294901760
    %1308 = vmatpush1.msra.mxu0 %v1307
    %v1309 = vand.u32 %v1269, 4294901760
    %1310 = vmatprep.subr.mxu0 %v1309
    %v1311 = vand.u32 %v1268, 4294901760
    %1312 = vmatpush1.msra.mxu0 %v1311
    %1313 = vmatprep.subr.mxu0 0.0
    %1314 = vmatpush1.msra.mxu0 0.0
    %1315 = vmatprep.subr.mxu0 0.0
    %1316 = vmatpush1.msra.mxu0 0.0
    %1317 = vmatprep.subr.mxu0 0.0
    %1318 = vmatpush1.msra.mxu0 0.0
    %1319 = vmatprep.subr.mxu0 0.0
    %1320 = vmatpush1.msra.mxu0 0.0
    %1321 = vmatprep.subr.mxu0 0.0
    %1322 = vmatpush1.msra.mxu0 0.0
    %1323 = vmatprep.subr.mxu0 0.0
    %1324 = vmatpush1.msra.mxu0 0.0
    %1325 = vmatprep.subr.mxu0 0.0
    %1326 = vmatpush1.msra.mxu0 0.0
    %1327 = vmatprep.subr.mxu0 0.0
    %1328 = vmatpush1.msra.mxu0 0.0
    %1329 = vmatprep.subr.mxu0 0.0
    %1330 = vmatpush1.msra.mxu0 0.0
    %1331 = vmatprep.subr.mxu0 0.0
    %1332 = vmatpush1.msra.mxu0 0.0
    %1333 = vmatprep.subr.mxu0 0.0
    %1334 = vmatpush1.msra.mxu0 0.0
    %1335 = vmatprep.subr.mxu0 0.0
    %1336 = vmatpush1.msra.mxu0 0.0
    %1337 = vmatprep.subr.mxu0 0.0
    %1338 = vmatpush1.msra.mxu0 0.0
    %1339 = vmatprep.subr.mxu0 0.0
    %1340 = vmatpush1.msra.mxu0 0.0
    %1341 = vmatprep.subr.mxu0 0.0
    %1342 = vmatpush1.msra.mxu0 0.0
    %1343 = vmatprep.subr.mxu0 0.0
    %1344 = vmatpush1.msra.mxu0 0.0
    %1345 = vmatprep.subr.mxu0 0.0
    %1346 = vmatpush1.msra.mxu0 0.0
    %1347 = vmatprep.subr.mxu0 0.0
    %1348 = vmatpush1.msra.mxu0 0.0
    %1349 = vmatprep.subr.mxu0 0.0
    %1350 = vmatpush1.msra.mxu0 0.0
    %1351 = vmatprep.subr.mxu0 0.0
    %1352 = vmatpush1.msra.mxu0 0.0
    %1353 = vmatprep.subr.mxu0 0.0
    %1354 = vmatpush1.msra.mxu0 0.0
    %1355 = vmatprep.subr.mxu0 0.0
    %1356 = vmatpush1.msra.mxu0 0.0
    %1357 = vmatprep.subr.mxu0 0.0
    %1358 = vmatpush1.msra.mxu0 0.0
    %1359 = vmatprep.mubr.f32.mxu0 0.0
    %v1360 = vand.u32 %v1275, 4294901760
    %v1361 = vsub.f32 %v1275, %v1360
    %v1362 = vand.u32 %v1361, 4294901760
    %v1363 = vsub.f32 %v1361, %v1362
    %v1364 = vand.u32 %v1363, 4294901760
    %1365 = vmatmul.mubr.f32.gmra.mrb[0].mxu0 %v1364
    %v1366 = vpop.f32.mrb[0].mxu0
    %v1367 = vadd.f32 %v164, %v1366
    %v1368 = vpop.f32.mrb[0].mxu0
    %v1369 = vadd.f32 %v165, %v1368
    %1370 = vdwg.mxu0
    %v1371 = vand.u32 %v1125, 4294901760
    %v1372 = vsub.f32 %v1125, %v1371
    %v1373 = vand.u32 %v1372, 4294901760
    %v1374 = vsub.f32 %v1372, %v1373
    %v1375 = vand.u32 %v1374, 4294901760
    %1376 = vmatprep.subr.mxu0 %v1375
    %v1377 = vand.u32 %v1124, 4294901760
    %v1378 = vsub.f32 %v1124, %v1377
    %v1379 = vand.u32 %v1378, 4294901760
    %v1380 = vsub.f32 %v1378, %v1379
    %v1381 = vand.u32 %v1380, 4294901760
    %1382 = vmatpush1.msra.mxu0 %v1381
    %v1383 = vand.u32 %v1129, 4294901760
    %v1384 = vsub.f32 %v1129, %v1383
    %v1385 = vand.u32 %v1384, 4294901760
    %v1386 = vsub.f32 %v1384, %v1385
    %v1387 = vand.u32 %v1386, 4294901760
    %1388 = vmatprep.subr.mxu0 %v1387
    %v1389 = vand.u32 %v1128, 4294901760
    %v1390 = vsub.f32 %v1128, %v1389
    %v1391 = vand.u32 %v1390, 4294901760
    %v1392 = vsub.f32 %v1390, %v1391
    %v1393 = vand.u32 %v1392, 4294901760
    %1394 = vmatpush1.msra.mxu0 %v1393
    %v1395 = vand.u32 %v1133, 4294901760
    %v1396 = vsub.f32 %v1133, %v1395
    %v1397 = vand.u32 %v1396, 4294901760
    %v1398 = vsub.f32 %v1396, %v1397
    %v1399 = vand.u32 %v1398, 4294901760
    %1400 = vmatprep.subr.mxu0 %v1399
    %v1401 = vand.u32 %v1132, 4294901760
    %v1402 = vsub.f32 %v1132, %v1401
    %v1403 = vand.u32 %v1402, 4294901760
    %v1404 = vsub.f32 %v1402, %v1403
    %v1405 = vand.u32 %v1404, 4294901760
    %1406 = vmatpush1.msra.mxu0 %v1405
    %v1407 = vand.u32 %v1193, 4294901760
    %v1408 = vsub.f32 %v1193, %v1407
    %v1409 = vand.u32 %v1408, 4294901760
    %v1410 = vsub.f32 %v1408, %v1409
    %v1411 = vand.u32 %v1410, 4294901760
    %1412 = vmatprep.subr.mxu0 %v1411
    %v1413 = vand.u32 %v1192, 4294901760
    %v1414 = vsub.f32 %v1192, %v1413
    %v1415 = vand.u32 %v1414, 4294901760
    %v1416 = vsub.f32 %v1414, %v1415
    %v1417 = vand.u32 %v1416, 4294901760
    %1418 = vmatpush1.msra.mxu0 %v1417
    %v1419 = vand.u32 %v1197, 4294901760
    %v1420 = vsub.f32 %v1197, %v1419
    %v1421 = vand.u32 %v1420, 4294901760
    %v1422 = vsub.f32 %v1420, %v1421
    %v1423 = vand.u32 %v1422, 4294901760
    %1424 = vmatprep.subr.mxu0 %v1423
    %v1425 = vand.u32 %v1196, 4294901760
    %v1426 = vsub.f32 %v1196, %v1425
    %v1427 = vand.u32 %v1426, 4294901760
    %v1428 = vsub.f32 %v1426, %v1427
    %v1429 = vand.u32 %v1428, 4294901760
    %1430 = vmatpush1.msra.mxu0 %v1429
    %v1431 = vand.u32 %v1201, 4294901760
    %v1432 = vsub.f32 %v1201, %v1431
    %v1433 = vand.u32 %v1432, 4294901760
    %v1434 = vsub.f32 %v1432, %v1433
    %v1435 = vand.u32 %v1434, 4294901760
    %1436 = vmatprep.subr.mxu0 %v1435
    %v1437 = vand.u32 %v1200, 4294901760
    %v1438 = vsub.f32 %v1200, %v1437
    %v1439 = vand.u32 %v1438, 4294901760
    %v1440 = vsub.f32 %v1438, %v1439
    %v1441 = vand.u32 %v1440, 4294901760
    %1442 = vmatpush1.msra.mxu0 %v1441
    %v1443 = vand.u32 %v1261, 4294901760
    %v1444 = vsub.f32 %v1261, %v1443
    %v1445 = vand.u32 %v1444, 4294901760
    %v1446 = vsub.f32 %v1444, %v1445
    %v1447 = vand.u32 %v1446, 4294901760
    %1448 = vmatprep.subr.mxu0 %v1447
    %v1449 = vand.u32 %v1260, 4294901760
    %v1450 = vsub.f32 %v1260, %v1449
    %v1451 = vand.u32 %v1450, 4294901760
    %v1452 = vsub.f32 %v1450, %v1451
    %v1453 = vand.u32 %v1452, 4294901760
    %1454 = vmatpush1.msra.mxu0 %v1453
    %v1455 = vand.u32 %v1265, 4294901760
    %v1456 = vsub.f32 %v1265, %v1455
    %v1457 = vand.u32 %v1456, 4294901760
    %v1458 = vsub.f32 %v1456, %v1457
    %v1459 = vand.u32 %v1458, 4294901760
    %1460 = vmatprep.subr.mxu0 %v1459
    %v1461 = vand.u32 %v1264, 4294901760
    %v1462 = vsub.f32 %v1264, %v1461
    %v1463 = vand.u32 %v1462, 4294901760
    %v1464 = vsub.f32 %v1462, %v1463
    %v1465 = vand.u32 %v1464, 4294901760
    %1466 = vmatpush1.msra.mxu0 %v1465
    %v1467 = vand.u32 %v1269, 4294901760
    %v1468 = vsub.f32 %v1269, %v1467
    %v1469 = vand.u32 %v1468, 4294901760
    %v1470 = vsub.f32 %v1468, %v1469
    %v1471 = vand.u32 %v1470, 4294901760
    %1472 = vmatprep.subr.mxu0 %v1471
    %v1473 = vand.u32 %v1268, 4294901760
    %v1474 = vsub.f32 %v1268, %v1473
    %v1475 = vand.u32 %v1474, 4294901760
    %v1476 = vsub.f32 %v1474, %v1475
    %v1477 = vand.u32 %v1476, 4294901760
    %1478 = vmatpush1.msra.mxu0 %v1477
    %1479 = vmatprep.subr.mxu0 0.0
    %1480 = vmatpush1.msra.mxu0 0.0
    %1481 = vmatprep.subr.mxu0 0.0
    %1482 = vmatpush1.msra.mxu0 0.0
    %1483 = vmatprep.subr.mxu0 0.0
    %1484 = vmatpush1.msra.mxu0 0.0
    %1485 = vmatprep.subr.mxu0 0.0
    %1486 = vmatpush1.msra.mxu0 0.0
    %1487 = vmatprep.subr.mxu0 0.0
    %1488 = vmatpush1.msra.mxu0 0.0
    %1489 = vmatprep.subr.mxu0 0.0
    %1490 = vmatpush1.msra.mxu0 0.0
    %1491 = vmatprep.subr.mxu0 0.0
    %1492 = vmatpush1.msra.mxu0 0.0
    %1493 = vmatprep.subr.mxu0 0.0
    %1494 = vmatpush1.msra.mxu0 0.0
    %1495 = vmatprep.subr.mxu0 0.0
    %1496 = vmatpush1.msra.mxu0 0.0
    %1497 = vmatprep.subr.mxu0 0.0
    %1498 = vmatpush1.msra.mxu0 0.0
    %1499 = vmatprep.subr.mxu0 0.0
    %1500 = vmatpush1.msra.mxu0 0.0
    %1501 = vmatprep.subr.mxu0 0.0
    %1502 = vmatpush1.msra.mxu0 0.0
    %1503 = vmatprep.subr.mxu0 0.0
    %1504 = vmatpush1.msra.mxu0 0.0
    %1505 = vmatprep.subr.mxu0 0.0
    %1506 = vmatpush1.msra.mxu0 0.0
    %1507 = vmatprep.subr.mxu0 0.0
    %1508 = vmatpush1.msra.mxu0 0.0
    %1509 = vmatprep.subr.mxu0 0.0
    %1510 = vmatpush1.msra.mxu0 0.0
    %1511 = vmatprep.subr.mxu0 0.0
    %1512 = vmatpush1.msra.mxu0 0.0
    %1513 = vmatprep.subr.mxu0 0.0
    %1514 = vmatpush1.msra.mxu0 0.0
    %1515 = vmatprep.subr.mxu0 0.0
    %1516 = vmatpush1.msra.mxu0 0.0
    %1517 = vmatprep.subr.mxu0 0.0
    %1518 = vmatpush1.msra.mxu0 0.0
    %1519 = vmatprep.subr.mxu0 0.0
    %1520 = vmatpush1.msra.mxu0 0.0
    %1521 = vmatprep.subr.mxu0 0.0
    %1522 = vmatpush1.msra.mxu0 0.0
    %1523 = vmatprep.subr.mxu0 0.0
    %1524 = vmatpush1.msra.mxu0 0.0
    %1525 = vmatprep.mubr.f32.mxu0 0.0
    %v1526 = vand.u32 %v1275, 4294901760
    %1527 = vmatmul.mubr.f32.gmra.mrb[0].mxu0 %v1526
    %v1528 = vpop.f32.mrb[0].mxu0
    %v1529 = vadd.f32 %v1367, %v1528
    %v1530 = vpop.f32.mrb[0].mxu0
    %v1531 = vadd.f32 %v1369, %v1530
    %1532 = vdwg.mxu0
    %v1533 = vand.u32 %v1125, 4294901760
    %v1534 = vsub.f32 %v1125, %v1533
    %1535 = vmatprep.subr.mxu0 %v1534
    %v1536 = vand.u32 %v1124, 4294901760
    %v1537 = vsub.f32 %v1124, %v1536
    %1538 = vmatpush1.msra.mxu0 %v1537
    %v1539 = vand.u32 %v1129, 4294901760
    %v1540 = vsub.f32 %v1129, %v1539
    %1541 = vmatprep.subr.mxu0 %v1540
    %v1542 = vand.u32 %v1128, 4294901760
    %v1543 = vsub.f32 %v1128, %v1542
    %1544 = vmatpush1.msra.mxu0 %v1543
    %v1545 = vand.u32 %v1133, 4294901760
    %v1546 = vsub.f32 %v1133, %v1545
    %1547 = vmatprep.subr.mxu0 %v1546
    %v1548 = vand.u32 %v1132, 4294901760
    %v1549 = vsub.f32 %v1132, %v1548
    %1550 = vmatpush1.msra.mxu0 %v1549
    %v1551 = vand.u32 %v1193, 4294901760
    %v1552 = vsub.f32 %v1193, %v1551
    %1553 = vmatprep.subr.mxu0 %v1552
    %v1554 = vand.u32 %v1192, 4294901760
    %v1555 = vsub.f32 %v1192, %v1554
    %1556 = vmatpush1.msra.mxu0 %v1555
    %v1557 = vand.u32 %v1197, 4294901760
    %v1558 = vsub.f32 %v1197, %v1557
    %1559 = vmatprep.subr.mxu0 %v1558
    %v1560 = vand.u32 %v1196, 4294901760
    %v1561 = vsub.f32 %v1196, %v1560
    %1562 = vmatpush1.msra.mxu0 %v1561
    %v1563 = vand.u32 %v1201, 4294901760
    %v1564 = vsub.f32 %v1201, %v1563
    %1565 = vmatprep.subr.mxu0 %v1564
    %v1566 = vand.u32 %v1200, 4294901760
    %v1567 = vsub.f32 %v1200, %v1566
    %1568 = vmatpush1.msra.mxu0 %v1567
    %v1569 = vand.u32 %v1261, 4294901760
    %v1570 = vsub.f32 %v1261, %v1569
    %1571 = vmatprep.subr.mxu0 %v1570
    %v1572 = vand.u32 %v1260, 4294901760
    %v1573 = vsub.f32 %v1260, %v1572
    %1574 = vmatpush1.msra.mxu0 %v1573
    %v1575 = vand.u32 %v1265, 4294901760
    %v1576 = vsub.f32 %v1265, %v1575
    %1577 = vmatprep.subr.mxu0 %v1576
    %v1578 = vand.u32 %v1264, 4294901760
    %v1579 = vsub.f32 %v1264, %v1578
    %1580 = vmatpush1.msra.mxu0 %v1579
    %v1581 = vand.u32 %v1269, 4294901760
    %v1582 = vsub.f32 %v1269, %v1581
    %1583 = vmatprep.subr.mxu0 %v1582
    %v1584 = vand.u32 %v1268, 4294901760
    %v1585 = vsub.f32 %v1268, %v1584
    %1586 = vmatpush1.msra.mxu0 %v1585
    %1587 = vmatprep.subr.mxu0 0.0
    %1588 = vmatpush1.msra.mxu0 0.0
    %1589 = vmatprep.subr.mxu0 0.0
    %1590 = vmatpush1.msra.mxu0 0.0
    %1591 = vmatprep.subr.mxu0 0.0
    %1592 = vmatpush1.msra.mxu0 0.0
    %1593 = vmatprep.subr.mxu0 0.0
    %1594 = vmatpush1.msra.mxu0 0.0
    %1595 = vmatprep.subr.mxu0 0.0
    %1596 = vmatpush1.msra.mxu0 0.0
    %1597 = vmatprep.subr.mxu0 0.0
    %1598 = vmatpush1.msra.mxu0 0.0
    %1599 = vmatprep.subr.mxu0 0.0
    %1600 = vmatpush1.msra.mxu0 0.0
    %1601 = vmatprep.subr.mxu0 0.0
    %1602 = vmatpush1.msra.mxu0 0.0
    %1603 = vmatprep.subr.mxu0 0.0
    %1604 = vmatpush1.msra.mxu0 0.0
    %1605 = vmatprep.subr.mxu0 0.0
    %1606 = vmatpush1.msra.mxu0 0.0
    %1607 = vmatprep.subr.mxu0 0.0
    %1608 = vmatpush1.msra.mxu0 0.0
    %1609 = vmatprep.subr.mxu0 0.0
    %1610 = vmatpush1.msra.mxu0 0.0
    %1611 = vmatprep.subr.mxu0 0.0
    %1612 = vmatpush1.msra.mxu0 0.0
    %1613 = vmatprep.subr.mxu0 0.0
    %1614 = vmatpush1.msra.mxu0 0.0
    %1615 = vmatprep.subr.mxu0 0.0
    %1616 = vmatpush1.msra.mxu0 0.0
    %1617 = vmatprep.subr.mxu0 0.0
    %1618 = vmatpush1.msra.mxu0 0.0
    %1619 = vmatprep.subr.mxu0 0.0
    %1620 = vmatpush1.msra.mxu0 0.0
    %1621 = vmatprep.subr.mxu0 0.0
    %1622 = vmatpush1.msra.mxu0 0.0
    %1623 = vmatprep.subr.mxu0 0.0
    %1624 = vmatpush1.msra.mxu0 0.0
    %1625 = vmatprep.subr.mxu0 0.0
    %1626 = vmatpush1.msra.mxu0 0.0
    %1627 = vmatprep.subr.mxu0 0.0
    %1628 = vmatpush1.msra.mxu0 0.0
    %1629 = vmatprep.subr.mxu0 0.0
    %1630 = vmatpush1.msra.mxu0 0.0
    %1631 = vmatprep.subr.mxu0 0.0
    %1632 = vmatpush1.msra.mxu0 0.0
    %1633 = vmatprep.mubr.f32.mxu0 0.0
    %v1634 = vand.u32 %v1275, 4294901760
    %v1635 = vsub.f32 %v1275, %v1634
    %1636 = vmatmul.mubr.f32.gmra.mrb[0].mxu0 %v1635
    %v1637 = vpop.f32.mrb[0].mxu0
    %v1638 = vadd.f32 %v1529, %v1637
    %v1639 = vpop.f32.mrb[0].mxu0
    %v1640 = vadd.f32 %v1531, %v1639
    %1641 = vdwg.mxu0
    %v1642 = vand.u32 %v1125, 4294901760
    %1643 = vmatprep.subr.mxu0 %v1642
    %v1644 = vand.u32 %v1124, 4294901760
    %1645 = vmatpush1.msra.mxu0 %v1644
    %v1646 = vand.u32 %v1129, 4294901760
    %1647 = vmatprep.subr.mxu0 %v1646
    %v1648 = vand.u32 %v1128, 4294901760
    %1649 = vmatpush1.msra.mxu0 %v1648
    %v1650 = vand.u32 %v1133, 4294901760
    %1651 = vmatprep.subr.mxu0 %v1650
    %v1652 = vand.u32 %v1132, 4294901760
    %1653 = vmatpush1.msra.mxu0 %v1652
    %v1654 = vand.u32 %v1193, 4294901760
    %1655 = vmatprep.subr.mxu0 %v1654
    %v1656 = vand.u32 %v1192, 4294901760
    %1657 = vmatpush1.msra.mxu0 %v1656
    %v1658 = vand.u32 %v1197, 4294901760
    %1659 = vmatprep.subr.mxu0 %v1658
    %v1660 = vand.u32 %v1196, 4294901760
    %1661 = vmatpush1.msra.mxu0 %v1660
    %v1662 = vand.u32 %v1201, 4294901760
    %1663 = vmatprep.subr.mxu0 %v1662
    %v1664 = vand.u32 %v1200, 4294901760
    %1665 = vmatpush1.msra.mxu0 %v1664
    %v1666 = vand.u32 %v1261, 4294901760
    %1667 = vmatprep.subr.mxu0 %v1666
    %v1668 = vand.u32 %v1260, 4294901760
    %1669 = vmatpush1.msra.mxu0 %v1668
    %v1670 = vand.u32 %v1265, 4294901760
    %1671 = vmatprep.subr.mxu0 %v1670
    %v1672 = vand.u32 %v1264, 4294901760
    %1673 = vmatpush1.msra.mxu0 %v1672
    %v1674 = vand.u32 %v1269, 4294901760
    %1675 = vmatprep.subr.mxu0 %v1674
    %v1676 = vand.u32 %v1268, 4294901760
    %1677 = vmatpush1.msra.mxu0 %v1676
    %1678 = vmatprep.subr.mxu0 0.0
    %1679 = vmatpush1.msra.mxu0 0.0
    %1680 = vmatprep.subr.mxu0 0.0
    %1681 = vmatpush1.msra.mxu0 0.0
    %1682 = vmatprep.subr.mxu0 0.0
    %1683 = vmatpush1.msra.mxu0 0.0
    %1684 = vmatprep.subr.mxu0 0.0
    %1685 = vmatpush1.msra.mxu0 0.0
    %1686 = vmatprep.subr.mxu0 0.0
    %1687 = vmatpush1.msra.mxu0 0.0
    %1688 = vmatprep.subr.mxu0 0.0
    %1689 = vmatpush1.msra.mxu0 0.0
    %1690 = vmatprep.subr.mxu0 0.0
    %1691 = vmatpush1.msra.mxu0 0.0
    %1692 = vmatprep.subr.mxu0 0.0
    %1693 = vmatpush1.msra.mxu0 0.0
    %1694 = vmatprep.subr.mxu0 0.0
    %1695 = vmatpush1.msra.mxu0 0.0
    %1696 = vmatprep.subr.mxu0 0.0
    %1697 = vmatpush1.msra.mxu0 0.0
    %1698 = vmatprep.subr.mxu0 0.0
    %1699 = vmatpush1.msra.mxu0 0.0
    %1700 = vmatprep.subr.mxu0 0.0
    %1701 = vmatpush1.msra.mxu0 0.0
    %1702 = vmatprep.subr.mxu0 0.0
    %1703 = vmatpush1.msra.mxu0 0.0
    %1704 = vmatprep.subr.mxu0 0.0
    %1705 = vmatpush1.msra.mxu0 0.0
    %1706 = vmatprep.subr.mxu0 0.0
    %1707 = vmatpush1.msra.mxu0 0.0
    %1708 = vmatprep.subr.mxu0 0.0
    %1709 = vmatpush1.msra.mxu0 0.0
    %1710 = vmatprep.subr.mxu0 0.0
    %1711 = vmatpush1.msra.mxu0 0.0
    %1712 = vmatprep.subr.mxu0 0.0
    %1713 = vmatpush1.msra.mxu0 0.0
    %1714 = vmatprep.subr.mxu0 0.0
    %1715 = vmatpush1.msra.mxu0 0.0
    %1716 = vmatprep.subr.mxu0 0.0
    %1717 = vmatpush1.msra.mxu0 0.0
    %1718 = vmatprep.subr.mxu0 0.0
    %1719 = vmatpush1.msra.mxu0 0.0
    %1720 = vmatprep.subr.mxu0 0.0
    %1721 = vmatpush1.msra.mxu0 0.0
    %1722 = vmatprep.subr.mxu0 0.0
    %1723 = vmatpush1.msra.mxu0 0.0
    %1724 = vmatprep.mubr.f32.mxu0 0.0
    %v1725 = vand.u32 %v1275, 4294901760
    %v1726 = vsub.f32 %v1275, %v1725
    %v1727 = vand.u32 %v1726, 4294901760
    %1728 = vmatmul.mubr.f32.gmra.mrb[0].mxu0 %v1727
    %v1729 = vpop.f32.mrb[0].mxu0
    %v1730 = vadd.f32 %v1638, %v1729
    %v1731 = vpop.f32.mrb[0].mxu0
    %v1732 = vadd.f32 %v1640, %v1731
    %1733 = vdwg.mxu0
    %v1734 = vand.u32 %v1125, 4294901760
    %v1735 = vsub.f32 %v1125, %v1734
    %v1736 = vand.u32 %v1735, 4294901760
    %1737 = vmatprep.subr.mxu0 %v1736
    %v1738 = vand.u32 %v1124, 4294901760
    %v1739 = vsub.f32 %v1124, %v1738
    %v1740 = vand.u32 %v1739, 4294901760
    %1741 = vmatpush1.msra.mxu0 %v1740
    %v1742 = vand.u32 %v1129, 4294901760
    %v1743 = vsub.f32 %v1129, %v1742
    %v1744 = vand.u32 %v1743, 4294901760
    %1745 = vmatprep.subr.mxu0 %v1744
    %v1746 = vand.u32 %v1128, 4294901760
    %v1747 = vsub.f32 %v1128, %v1746
    %v1748 = vand.u32 %v1747, 4294901760
    %1749 = vmatpush1.msra.mxu0 %v1748
    %v1750 = vand.u32 %v1133, 4294901760
    %v1751 = vsub.f32 %v1133, %v1750
    %v1752 = vand.u32 %v1751, 4294901760
    %1753 = vmatprep.subr.mxu0 %v1752
    %v1754 = vand.u32 %v1132, 4294901760
    %v1755 = vsub.f32 %v1132, %v1754
    %v1756 = vand.u32 %v1755, 4294901760
    %1757 = vmatpush1.msra.mxu0 %v1756
    %v1758 = vand.u32 %v1193, 4294901760
    %v1759 = vsub.f32 %v1193, %v1758
    %v1760 = vand.u32 %v1759, 4294901760
    %1761 = vmatprep.subr.mxu0 %v1760
    %v1762 = vand.u32 %v1192, 4294901760
    %v1763 = vsub.f32 %v1192, %v1762
    %v1764 = vand.u32 %v1763, 4294901760
    %1765 = vmatpush1.msra.mxu0 %v1764
    %v1766 = vand.u32 %v1197, 4294901760
    %v1767 = vsub.f32 %v1197, %v1766
    %v1768 = vand.u32 %v1767, 4294901760
    %1769 = vmatprep.subr.mxu0 %v1768
    %v1770 = vand.u32 %v1196, 4294901760
    %v1771 = vsub.f32 %v1196, %v1770
    %v1772 = vand.u32 %v1771, 4294901760
    %1773 = vmatpush1.msra.mxu0 %v1772
    %v1774 = vand.u32 %v1201, 4294901760
    %v1775 = vsub.f32 %v1201, %v1774
    %v1776 = vand.u32 %v1775, 4294901760
    %1777 = vmatprep.subr.mxu0 %v1776
    %v1778 = vand.u32 %v1200, 4294901760
    %v1779 = vsub.f32 %v1200, %v1778
    %v1780 = vand.u32 %v1779, 4294901760
    %1781 = vmatpush1.msra.mxu0 %v1780
    %v1782 = vand.u32 %v1261, 4294901760
    %v1783 = vsub.f32 %v1261, %v1782
    %v1784 = vand.u32 %v1783, 4294901760
    %1785 = vmatprep.subr.mxu0 %v1784
    %v1786 = vand.u32 %v1260, 4294901760
    %v1787 = vsub.f32 %v1260, %v1786
    %v1788 = vand.u32 %v1787, 4294901760
    %1789 = vmatpush1.msra.mxu0 %v1788
    %v1790 = vand.u32 %v1265, 4294901760
    %v1791 = vsub.f32 %v1265, %v1790
    %v1792 = vand.u32 %v1791, 4294901760
    %1793 = vmatprep.subr.mxu0 %v1792
    %v1794 = vand.u32 %v1264, 4294901760
    %v1795 = vsub.f32 %v1264, %v1794
    %v1796 = vand.u32 %v1795, 4294901760
    %1797 = vmatpush1.msra.mxu0 %v1796
    %v1798 = vand.u32 %v1269, 4294901760
    %v1799 = vsub.f32 %v1269, %v1798
    %v1800 = vand.u32 %v1799, 4294901760
    %1801 = vmatprep.subr.mxu0 %v1800
    %v1802 = vand.u32 %v1268, 4294901760
    %v1803 = vsub.f32 %v1268, %v1802
    %v1804 = vand.u32 %v1803, 4294901760
    %1805 = vmatpush1.msra.mxu0 %v1804
    %1806 = vmatprep.subr.mxu0 0.0
    %1807 = vmatpush1.msra.mxu0 0.0
    %1808 = vmatprep.subr.mxu0 0.0
    %1809 = vmatpush1.msra.mxu0 0.0
    %1810 = vmatprep.subr.mxu0 0.0
    %1811 = vmatpush1.msra.mxu0 0.0
    %1812 = vmatprep.subr.mxu0 0.0
    %1813 = vmatpush1.msra.mxu0 0.0
    %1814 = vmatprep.subr.mxu0 0.0
    %1815 = vmatpush1.msra.mxu0 0.0
    %1816 = vmatprep.subr.mxu0 0.0
    %1817 = vmatpush1.msra.mxu0 0.0
    %1818 = vmatprep.subr.mxu0 0.0
    %1819 = vmatpush1.msra.mxu0 0.0
    %1820 = vmatprep.subr.mxu0 0.0
    %1821 = vmatpush1.msra.mxu0 0.0
    %1822 = vmatprep.subr.mxu0 0.0
    %1823 = vmatpush1.msra.mxu0 0.0
    %1824 = vmatprep.subr.mxu0 0.0
    %1825 = vmatpush1.msra.mxu0 0.0
    %1826 = vmatprep.subr.mxu0 0.0
    %1827 = vmatpush1.msra.mxu0 0.0
    %1828 = vmatprep.subr.mxu0 0.0
    %1829 = vmatpush1.msra.mxu0 0.0
    %1830 = vmatprep.subr.mxu0 0.0
    %1831 = vmatpush1.msra.mxu0 0.0
    %1832 = vmatprep.subr.mxu0 0.0
    %1833 = vmatpush1.msra.mxu0 0.0
    %1834 = vmatprep.subr.mxu0 0.0
    %1835 = vmatpush1.msra.mxu0 0.0
    %1836 = vmatprep.subr.mxu0 0.0
    %1837 = vmatpush1.msra.mxu0 0.0
    %1838 = vmatprep.subr.mxu0 0.0
    %1839 = vmatpush1.msra.mxu0 0.0
    %1840 = vmatprep.subr.mxu0 0.0
    %1841 = vmatpush1.msra.mxu0 0.0
    %1842 = vmatprep.subr.mxu0 0.0
    %1843 = vmatpush1.msra.mxu0 0.0
    %1844 = vmatprep.subr.mxu0 0.0
    %1845 = vmatpush1.msra.mxu0 0.0
    %1846 = vmatprep.subr.mxu0 0.0
    %1847 = vmatpush1.msra.mxu0 0.0
    %1848 = vmatprep.subr.mxu0 0.0
    %1849 = vmatpush1.msra.mxu0 0.0
    %1850 = vmatprep.subr.mxu0 0.0
    %1851 = vmatpush1.msra.mxu0 0.0
    %1852 = vmatprep.mubr.f32.mxu0 0.0
    %v1853 = vand.u32 %v1275, 4294901760
    %1854 = vmatmul.mubr.f32.gmra.mrb[0].mxu0 %v1853
    %v1855 = vpop.f32.mrb[0].mxu0
    %v1856 = vadd.f32 %v1730, %v1855
    %v1857 = vpop.f32.mrb[0].mxu0
    %v1858 = vadd.f32 %v1732, %v1857
    %1859 = vdwg.mxu0
    %v1860 = vand.u32 %v1125, 4294901760
    %1861 = vmatprep.subr.mxu0 %v1860
    %v1862 = vand.u32 %v1124, 4294901760
    %1863 = vmatpush1.msra.mxu0 %v1862
    %v1864 = vand.u32 %v1129, 4294901760
    %1865 = vmatprep.subr.mxu0 %v1864
    %v1866 = vand.u32 %v1128, 4294901760
    %1867 = vmatpush1.msra.mxu0 %v1866
    %v1868 = vand.u32 %v1133, 4294901760
    %1869 = vmatprep.subr.mxu0 %v1868
    %v1870 = vand.u32 %v1132, 4294901760
    %1871 = vmatpush1.msra.mxu0 %v1870
    %v1872 = vand.u32 %v1193, 4294901760
    %1873 = vmatprep.subr.mxu0 %v1872
    %v1874 = vand.u32 %v1192, 4294901760
    %1875 = vmatpush1.msra.mxu0 %v1874
    %v1876 = vand.u32 %v1197, 4294901760
    %1877 = vmatprep.subr.mxu0 %v1876
    %v1878 = vand.u32 %v1196, 4294901760
    %1879 = vmatpush1.msra.mxu0 %v1878
    %v1880 = vand.u32 %v1201, 4294901760
    %1881 = vmatprep.subr.mxu0 %v1880
    %v1882 = vand.u32 %v1200, 4294901760
    %1883 = vmatpush1.msra.mxu0 %v1882
    %v1884 = vand.u32 %v1261, 4294901760
    %1885 = vmatprep.subr.mxu0 %v1884
    %v1886 = vand.u32 %v1260, 4294901760
    %1887 = vmatpush1.msra.mxu0 %v1886
    %v1888 = vand.u32 %v1265, 4294901760
    %1889 = vmatprep.subr.mxu0 %v1888
    %v1890 = vand.u32 %v1264, 4294901760
    %1891 = vmatpush1.msra.mxu0 %v1890
    %v1892 = vand.u32 %v1269, 4294901760
    %1893 = vmatprep.subr.mxu0 %v1892
    %v1894 = vand.u32 %v1268, 4294901760
    %1895 = vmatpush1.msra.mxu0 %v1894
    %1896 = vmatprep.subr.mxu0 0.0
    %1897 = vmatpush1.msra.mxu0 0.0
    %1898 = vmatprep.subr.mxu0 0.0
    %1899 = vmatpush1.msra.mxu0 0.0
    %1900 = vmatprep.subr.mxu0 0.0
    %1901 = vmatpush1.msra.mxu0 0.0
    %1902 = vmatprep.subr.mxu0 0.0
    %1903 = vmatpush1.msra.mxu0 0.0
    %1904 = vmatprep.subr.mxu0 0.0
    %1905 = vmatpush1.msra.mxu0 0.0
    %1906 = vmatprep.subr.mxu0 0.0
    %1907 = vmatpush1.msra.mxu0 0.0
    %1908 = vmatprep.subr.mxu0 0.0
    %1909 = vmatpush1.msra.mxu0 0.0
    %1910 = vmatprep.subr.mxu0 0.0
    %1911 = vmatpush1.msra.mxu0 0.0
    %1912 = vmatprep.subr.mxu0 0.0
    %1913 = vmatpush1.msra.mxu0 0.0
    %1914 = vmatprep.subr.mxu0 0.0
    %1915 = vmatpush1.msra.mxu0 0.0
    %1916 = vmatprep.subr.mxu0 0.0
    %1917 = vmatpush1.msra.mxu0 0.0
    %1918 = vmatprep.subr.mxu0 0.0
    %1919 = vmatpush1.msra.mxu0 0.0
    %1920 = vmatprep.subr.mxu0 0.0
    %1921 = vmatpush1.msra.mxu0 0.0
    %1922 = vmatprep.subr.mxu0 0.0
    %1923 = vmatpush1.msra.mxu0 0.0
    %1924 = vmatprep.subr.mxu0 0.0
    %1925 = vmatpush1.msra.mxu0 0.0
    %1926 = vmatprep.subr.mxu0 0.0
    %1927 = vmatpush1.msra.mxu0 0.0
    %1928 = vmatprep.subr.mxu0 0.0
    %1929 = vmatpush1.msra.mxu0 0.0
    %1930 = vmatprep.subr.mxu0 0.0
    %1931 = vmatpush1.msra.mxu0 0.0
    %1932 = vmatprep.subr.mxu0 0.0
    %1933 = vmatpush1.msra.mxu0 0.0
    %1934 = vmatprep.subr.mxu0 0.0
    %1935 = vmatpush1.msra.mxu0 0.0
    %1936 = vmatprep.subr.mxu0 0.0
    %1937 = vmatpush1.msra.mxu0 0.0
    %1938 = vmatprep.subr.mxu0 0.0
    %1939 = vmatpush1.msra.mxu0 0.0
    %1940 = vmatprep.subr.mxu0 0.0
    %1941 = vmatpush1.msra.mxu0 0.0
    %1942 = vmatprep.mubr.f32.mxu0 0.0
    %v1943 = vand.u32 %v1275, 4294901760
    %1944 = vmatmul.mubr.f32.gmra.mrb[0].mxu0 %v1943
    %v1945 = vpop.f32.mrb[0].mxu0
    %v1946 = vadd.f32 %v1856, %v1945
    %v1947 = vpop.f32.mrb[0].mxu0
    %v1948 = vadd.f32 %v1858, %v1947
    %1949 = vdwg.mxu0
    %v1950 = vand.u32 %v1127, 4294901760
    %1951 = vmatprep.subr.mxu0 %v1950
    %v1952 = vand.u32 %v1126, 4294901760
    %1953 = vmatpush1.msra.mxu0 %v1952
    %v1954 = vand.u32 %v1131, 4294901760
    %1955 = vmatprep.subr.mxu0 %v1954
    %v1956 = vand.u32 %v1130, 4294901760
    %1957 = vmatpush1.msra.mxu0 %v1956
    %v1958 = vand.u32 %v1135, 4294901760
    %1959 = vmatprep.subr.mxu0 %v1958
    %v1960 = vand.u32 %v1134, 4294901760
    %1961 = vmatpush1.msra.mxu0 %v1960
    %v1962 = vand.u32 %v1195, 4294901760
    %1963 = vmatprep.subr.mxu0 %v1962
    %v1964 = vand.u32 %v1194, 4294901760
    %1965 = vmatpush1.msra.mxu0 %v1964
    %v1966 = vand.u32 %v1199, 4294901760
    %1967 = vmatprep.subr.mxu0 %v1966
    %v1968 = vand.u32 %v1198, 4294901760
    %1969 = vmatpush1.msra.mxu0 %v1968
    %v1970 = vand.u32 %v1203, 4294901760
    %1971 = vmatprep.subr.mxu0 %v1970
    %v1972 = vand.u32 %v1202, 4294901760
    %1973 = vmatpush1.msra.mxu0 %v1972
    %v1974 = vand.u32 %v1263, 4294901760
    %1975 = vmatprep.subr.mxu0 %v1974
    %v1976 = vand.u32 %v1262, 4294901760
    %1977 = vmatpush1.msra.mxu0 %v1976
    %v1978 = vand.u32 %v1267, 4294901760
    %1979 = vmatprep.subr.mxu0 %v1978
    %v1980 = vand.u32 %v1266, 4294901760
    %1981 = vmatpush1.msra.mxu0 %v1980
    %v1982 = vand.u32 %v1271, 4294901760
    %1983 = vmatprep.subr.mxu0 %v1982
    %v1984 = vand.u32 %v1270, 4294901760
    %1985 = vmatpush1.msra.mxu0 %v1984
    %1986 = vmatprep.subr.mxu0 0.0
    %1987 = vmatpush1.msra.mxu0 0.0
    %1988 = vmatprep.subr.mxu0 0.0
    %1989 = vmatpush1.msra.mxu0 0.0
    %1990 = vmatprep.subr.mxu0 0.0
    %1991 = vmatpush1.msra.mxu0 0.0
    %1992 = vmatprep.subr.mxu0 0.0
    %1993 = vmatpush1.msra.mxu0 0.0
    %1994 = vmatprep.subr.mxu0 0.0
    %1995 = vmatpush1.msra.mxu0 0.0
    %1996 = vmatprep.subr.mxu0 0.0
    %1997 = vmatpush1.msra.mxu0 0.0
    %1998 = vmatprep.subr.mxu0 0.0
    %1999 = vmatpush1.msra.mxu0 0.0
    %2000 = vmatprep.subr.mxu0 0.0
    %2001 = vmatpush1.msra.mxu0 0.0
    %2002 = vmatprep.subr.mxu0 0.0
    %2003 = vmatpush1.msra.mxu0 0.0
    %2004 = vmatprep.subr.mxu0 0.0
    %2005 = vmatpush1.msra.mxu0 0.0
    %2006 = vmatprep.subr.mxu0 0.0
    %2007 = vmatpush1.msra.mxu0 0.0
    %2008 = vmatprep.subr.mxu0 0.0
    %2009 = vmatpush1.msra.mxu0 0.0
    %2010 = vmatprep.subr.mxu0 0.0
    %2011 = vmatpush1.msra.mxu0 0.0
    %2012 = vmatprep.subr.mxu0 0.0
    %2013 = vmatpush1.msra.mxu0 0.0
    %2014 = vmatprep.subr.mxu0 0.0
    %2015 = vmatpush1.msra.mxu0 0.0
    %2016 = vmatprep.subr.mxu0 0.0
    %2017 = vmatpush1.msra.mxu0 0.0
    %2018 = vmatprep.subr.mxu0 0.0
    %2019 = vmatpush1.msra.mxu0 0.0
    %2020 = vmatprep.subr.mxu0 0.0
    %2021 = vmatpush1.msra.mxu0 0.0
    %2022 = vmatprep.subr.mxu0 0.0
    %2023 = vmatpush1.msra.mxu0 0.0
    %2024 = vmatprep.subr.mxu0 0.0
    %2025 = vmatpush1.msra.mxu0 0.0
    %2026 = vmatprep.subr.mxu0 0.0
    %2027 = vmatpush1.msra.mxu0 0.0
    %2028 = vmatprep.subr.mxu0 0.0
    %2029 = vmatpush1.msra.mxu0 0.0
    %2030 = vmatprep.subr.mxu0 0.0
    %2031 = vmatpush1.msra.mxu0 0.0
    %2032 = vmatprep.mubr.f32.mxu0 0.0
    %v2033 = vand.u32 %v1275, 4294901760
    %v2034 = vsub.f32 %v1275, %v2033
    %v2035 = vand.u32 %v2034, 4294901760
    %v2036 = vsub.f32 %v2034, %v2035
    %v2037 = vand.u32 %v2036, 4294901760
    %2038 = vmatmul.mubr.f32.gmra.mrb[0].mxu0 %v2037
    %v2039 = vpop.f32.mrb[0].mxu0
    %v2040 = vadd.f32 %v166, %v2039
    %v2041 = vpop.f32.mrb[0].mxu0
    %v2042 = vadd.f32 %v167, %v2041
    %2043 = vdwg.mxu0
    %v2044 = vand.u32 %v1127, 4294901760
    %v2045 = vsub.f32 %v1127, %v2044
    %v2046 = vand.u32 %v2045, 4294901760
    %v2047 = vsub.f32 %v2045, %v2046
    %v2048 = vand.u32 %v2047, 4294901760
    %2049 = vmatprep.subr.mxu0 %v2048
    %v2050 = vand.u32 %v1126, 4294901760
    %v2051 = vsub.f32 %v1126, %v2050
    %v2052 = vand.u32 %v2051, 4294901760
    %v2053 = vsub.f32 %v2051, %v2052
    %v2054 = vand.u32 %v2053, 4294901760
    %2055 = vmatpush1.msra.mxu0 %v2054
    %v2056 = vand.u32 %v1131, 4294901760
    %v2057 = vsub.f32 %v1131, %v2056
    %v2058 = vand.u32 %v2057, 4294901760
    %v2059 = vsub.f32 %v2057, %v2058
    %v2060 = vand.u32 %v2059, 4294901760
    %2061 = vmatprep.subr.mxu0 %v2060
    %v2062 = vand.u32 %v1130, 4294901760
    %v2063 = vsub.f32 %v1130, %v2062
    %v2064 = vand.u32 %v2063, 4294901760
    %v2065 = vsub.f32 %v2063, %v2064
    %v2066 = vand.u32 %v2065, 4294901760
    %2067 = vmatpush1.msra.mxu0 %v2066
    %v2068 = vand.u32 %v1135, 4294901760
    %v2069 = vsub.f32 %v1135, %v2068
    %v2070 = vand.u32 %v2069, 4294901760
    %v2071 = vsub.f32 %v2069, %v2070
    %v2072 = vand.u32 %v2071, 4294901760
    %2073 = vmatprep.subr.mxu0 %v2072
    %v2074 = vand.u32 %v1134, 4294901760
    %v2075 = vsub.f32 %v1134, %v2074
    %v2076 = vand.u32 %v2075, 4294901760
    %v2077 = vsub.f32 %v2075, %v2076
    %v2078 = vand.u32 %v2077, 4294901760
    %2079 = vmatpush1.msra.mxu0 %v2078
    %v2080 = vand.u32 %v1195, 4294901760
    %v2081 = vsub.f32 %v1195, %v2080
    %v2082 = vand.u32 %v2081, 4294901760
    %v2083 = vsub.f32 %v2081, %v2082
    %v2084 = vand.u32 %v2083, 4294901760
    %2085 = vmatprep.subr.mxu0 %v2084
    %v2086 = vand.u32 %v1194, 4294901760
    %v2087 = vsub.f32 %v1194, %v2086
    %v2088 = vand.u32 %v2087, 4294901760
    %v2089 = vsub.f32 %v2087, %v2088
    %v2090 = vand.u32 %v2089, 4294901760
    %2091 = vmatpush1.msra.mxu0 %v2090
    %v2092 = vand.u32 %v1199, 4294901760
    %v2093 = vsub.f32 %v1199, %v2092
    %v2094 = vand.u32 %v2093, 4294901760
    %v2095 = vsub.f32 %v2093, %v2094
    %v2096 = vand.u32 %v2095, 4294901760
    %2097 = vmatprep.subr.mxu0 %v2096
    %v2098 = vand.u32 %v1198, 4294901760
    %v2099 = vsub.f32 %v1198, %v2098
    %v2100 = vand.u32 %v2099, 4294901760
    %v2101 = vsub.f32 %v2099, %v2100
    %v2102 = vand.u32 %v2101, 4294901760
    %2103 = vmatpush1.msra.mxu0 %v2102
    %v2104 = vand.u32 %v1203, 4294901760
    %v2105 = vsub.f32 %v1203, %v2104
    %v2106 = vand.u32 %v2105, 4294901760
    %v2107 = vsub.f32 %v2105, %v2106
    %v2108 = vand.u32 %v2107, 4294901760
    %2109 = vmatprep.subr.mxu0 %v2108
    %v2110 = vand.u32 %v1202, 4294901760
    %v2111 = vsub.f32 %v1202, %v2110
    %v2112 = vand.u32 %v2111, 4294901760
    %v2113 = vsub.f32 %v2111, %v2112
    %v2114 = vand.u32 %v2113, 4294901760
    %2115 = vmatpush1.msra.mxu0 %v2114
    %v2116 = vand.u32 %v1263, 4294901760
    %v2117 = vsub.f32 %v1263, %v2116
    %v2118 = vand.u32 %v2117, 4294901760
    %v2119 = vsub.f32 %v2117, %v2118
    %v2120 = vand.u32 %v2119, 4294901760
    %2121 = vmatprep.subr.mxu0 %v2120
    %v2122 = vand.u32 %v1262, 4294901760
    %v2123 = vsub.f32 %v1262, %v2122
    %v2124 = vand.u32 %v2123, 4294901760
    %v2125 = vsub.f32 %v2123, %v2124
    %v2126 = vand.u32 %v2125, 4294901760
    %2127 = vmatpush1.msra.mxu0 %v2126
    %v2128 = vand.u32 %v1267, 4294901760
    %v2129 = vsub.f32 %v1267, %v2128
    %v2130 = vand.u32 %v2129, 4294901760
    %v2131 = vsub.f32 %v2129, %v2130
    %v2132 = vand.u32 %v2131, 4294901760
    %2133 = vmatprep.subr.mxu0 %v2132
    %v2134 = vand.u32 %v1266, 4294901760
    %v2135 = vsub.f32 %v1266, %v2134
    %v2136 = vand.u32 %v2135, 4294901760
    %v2137 = vsub.f32 %v2135, %v2136
    %v2138 = vand.u32 %v2137, 4294901760
    %2139 = vmatpush1.msra.mxu0 %v2138
    %v2140 = vand.u32 %v1271, 4294901760
    %v2141 = vsub.f32 %v1271, %v2140
    %v2142 = vand.u32 %v2141, 4294901760
    %v2143 = vsub.f32 %v2141, %v2142
    %v2144 = vand.u32 %v2143, 4294901760
    %2145 = vmatprep.subr.mxu0 %v2144
    %v2146 = vand.u32 %v1270, 4294901760
    %v2147 = vsub.f32 %v1270, %v2146
    %v2148 = vand.u32 %v2147, 4294901760
    %v2149 = vsub.f32 %v2147, %v2148
    %v2150 = vand.u32 %v2149, 4294901760
    %2151 = vmatpush1.msra.mxu0 %v2150
    %2152 = vmatprep.subr.mxu0 0.0
    %2153 = vmatpush1.msra.mxu0 0.0
    %2154 = vmatprep.subr.mxu0 0.0
    %2155 = vmatpush1.msra.mxu0 0.0
    %2156 = vmatprep.subr.mxu0 0.0
    %2157 = vmatpush1.msra.mxu0 0.0
    %2158 = vmatprep.subr.mxu0 0.0
    %2159 = vmatpush1.msra.mxu0 0.0
    %2160 = vmatprep.subr.mxu0 0.0
    %2161 = vmatpush1.msra.mxu0 0.0
    %2162 = vmatprep.subr.mxu0 0.0
    %2163 = vmatpush1.msra.mxu0 0.0
    %2164 = vmatprep.subr.mxu0 0.0
    %2165 = vmatpush1.msra.mxu0 0.0
    %2166 = vmatprep.subr.mxu0 0.0
    %2167 = vmatpush1.msra.mxu0 0.0
    %2168 = vmatprep.subr.mxu0 0.0
    %2169 = vmatpush1.msra.mxu0 0.0
    %2170 = vmatprep.subr.mxu0 0.0
    %2171 = vmatpush1.msra.mxu0 0.0
    %2172 = vmatprep.subr.mxu0 0.0
    %2173 = vmatpush1.msra.mxu0 0.0
    %2174 = vmatprep.subr.mxu0 0.0
    %2175 = vmatpush1.msra.mxu0 0.0
    %2176 = vmatprep.subr.mxu0 0.0
    %2177 = vmatpush1.msra.mxu0 0.0
    %2178 = vmatprep.subr.mxu0 0.0
    %2179 = vmatpush1.msra.mxu0 0.0
    %2180 = vmatprep.subr.mxu0 0.0
    %2181 = vmatpush1.msra.mxu0 0.0
    %2182 = vmatprep.subr.mxu0 0.0
    %2183 = vmatpush1.msra.mxu0 0.0
    %2184 = vmatprep.subr.mxu0 0.0
    %2185 = vmatpush1.msra.mxu0 0.0
    %2186 = vmatprep.subr.mxu0 0.0
    %2187 = vmatpush1.msra.mxu0 0.0
    %2188 = vmatprep.subr.mxu0 0.0
    %2189 = vmatpush1.msra.mxu0 0.0
    %2190 = vmatprep.subr.mxu0 0.0
    %2191 = vmatpush1.msra.mxu0 0.0
    %2192 = vmatprep.subr.mxu0 0.0
    %2193 = vmatpush1.msra.mxu0 0.0
    %2194 = vmatprep.subr.mxu0 0.0
    %2195 = vmatpush1.msra.mxu0 0.0
    %2196 = vmatprep.subr.mxu0 0.0
    %2197 = vmatpush1.msra.mxu0 0.0
    %2198 = vmatprep.mubr.f32.mxu0 0.0
    %v2199 = vand.u32 %v1275, 4294901760
    %2200 = vmatmul.mubr.f32.gmra.mrb[0].mxu0 %v2199
    %v2201 = vpop.f32.mrb[0].mxu0
    %v2202 = vadd.f32 %v2040, %v2201
    %v2203 = vpop.f32.mrb[0].mxu0
    %v2204 = vadd.f32 %v2042, %v2203
    %2205 = vdwg.mxu0
    %v2206 = vand.u32 %v1127, 4294901760
    %v2207 = vsub.f32 %v1127, %v2206
    %2208 = vmatprep.subr.mxu0 %v2207
    %v2209 = vand.u32 %v1126, 4294901760
    %v2210 = vsub.f32 %v1126, %v2209
    %2211 = vmatpush1.msra.mxu0 %v2210
    %v2212 = vand.u32 %v1131, 4294901760
    %v2213 = vsub.f32 %v1131, %v2212
    %2214 = vmatprep.subr.mxu0 %v2213
    %v2215 = vand.u32 %v1130, 4294901760
    %v2216 = vsub.f32 %v1130, %v2215
    %2217 = vmatpush1.msra.mxu0 %v2216
    %v2218 = vand.u32 %v1135, 4294901760
    %v2219 = vsub.f32 %v1135, %v2218
    %2220 = vmatprep.subr.mxu0 %v2219
    %v2221 = vand.u32 %v1134, 4294901760
    %v2222 = vsub.f32 %v1134, %v2221
    %2223 = vmatpush1.msra.mxu0 %v2222
    %v2224 = vand.u32 %v1195, 4294901760
    %v2225 = vsub.f32 %v1195, %v2224
    %2226 = vmatprep.subr.mxu0 %v2225
    %v2227 = vand.u32 %v1194, 4294901760
    %v2228 = vsub.f32 %v1194, %v2227
    %2229 = vmatpush1.msra.mxu0 %v2228
    %v2230 = vand.u32 %v1199, 4294901760
    %v2231 = vsub.f32 %v1199, %v2230
    %2232 = vmatprep.subr.mxu0 %v2231
    %v2233 = vand.u32 %v1198, 4294901760
    %v2234 = vsub.f32 %v1198, %v2233
    %2235 = vmatpush1.msra.mxu0 %v2234
    %v2236 = vand.u32 %v1203, 4294901760
    %v2237 = vsub.f32 %v1203, %v2236
    %2238 = vmatprep.subr.mxu0 %v2237
    %v2239 = vand.u32 %v1202, 4294901760
    %v2240 = vsub.f32 %v1202, %v2239
    %2241 = vmatpush1.msra.mxu0 %v2240
    %v2242 = vand.u32 %v1263, 4294901760
    %v2243 = vsub.f32 %v1263, %v2242
    %2244 = vmatprep.subr.mxu0 %v2243
    %v2245 = vand.u32 %v1262, 4294901760
    %v2246 = vsub.f32 %v1262, %v2245
    %2247 = vmatpush1.msra.mxu0 %v2246
    %v2248 = vand.u32 %v1267, 4294901760
    %v2249 = vsub.f32 %v1267, %v2248
    %2250 = vmatprep.subr.mxu0 %v2249
    %v2251 = vand.u32 %v1266, 4294901760
    %v2252 = vsub.f32 %v1266, %v2251
    %2253 = vmatpush1.msra.mxu0 %v2252
    %v2254 = vand.u32 %v1271, 4294901760
    %v2255 = vsub.f32 %v1271, %v2254
    %2256 = vmatprep.subr.mxu0 %v2255
    %v2257 = vand.u32 %v1270, 4294901760
    %v2258 = vsub.f32 %v1270, %v2257
    %2259 = vmatpush1.msra.mxu0 %v2258
    %2260 = vmatprep.subr.mxu0 0.0
    %2261 = vmatpush1.msra.mxu0 0.0
    %2262 = vmatprep.subr.mxu0 0.0
    %2263 = vmatpush1.msra.mxu0 0.0
    %2264 = vmatprep.subr.mxu0 0.0
    %2265 = vmatpush1.msra.mxu0 0.0
    %2266 = vmatprep.subr.mxu0 0.0
    %2267 = vmatpush1.msra.mxu0 0.0
    %2268 = vmatprep.subr.mxu0 0.0
    %2269 = vmatpush1.msra.mxu0 0.0
    %2270 = vmatprep.subr.mxu0 0.0
    %2271 = vmatpush1.msra.mxu0 0.0
    %2272 = vmatprep.subr.mxu0 0.0
    %2273 = vmatpush1.msra.mxu0 0.0
    %2274 = vmatprep.subr.mxu0 0.0
    %2275 = vmatpush1.msra.mxu0 0.0
    %2276 = vmatprep.subr.mxu0 0.0
    %2277 = vmatpush1.msra.mxu0 0.0
    %2278 = vmatprep.subr.mxu0 0.0
    %2279 = vmatpush1.msra.mxu0 0.0
    %2280 = vmatprep.subr.mxu0 0.0
    %2281 = vmatpush1.msra.mxu0 0.0
    %2282 = vmatprep.subr.mxu0 0.0
    %2283 = vmatpush1.msra.mxu0 0.0
    %2284 = vmatprep.subr.mxu0 0.0
    %2285 = vmatpush1.msra.mxu0 0.0
    %2286 = vmatprep.subr.mxu0 0.0
    %2287 = vmatpush1.msra.mxu0 0.0
    %2288 = vmatprep.subr.mxu0 0.0
    %2289 = vmatpush1.msra.mxu0 0.0
    %2290 = vmatprep.subr.mxu0 0.0
    %2291 = vmatpush1.msra.mxu0 0.0
    %2292 = vmatprep.subr.mxu0 0.0
    %2293 = vmatpush1.msra.mxu0 0.0
    %2294 = vmatprep.subr.mxu0 0.0
    %2295 = vmatpush1.msra.mxu0 0.0
    %2296 = vmatprep.subr.mxu0 0.0
    %2297 = vmatpush1.msra.mxu0 0.0
    %2298 = vmatprep.subr.mxu0 0.0
    %2299 = vmatpush1.msra.mxu0 0.0
    %2300 = vmatprep.subr.mxu0 0.0
    %2301 = vmatpush1.msra.mxu0 0.0
    %2302 = vmatprep.subr.mxu0 0.0
    %2303 = vmatpush1.msra.mxu0 0.0
    %2304 = vmatprep.subr.mxu0 0.0
    %2305 = vmatpush1.msra.mxu0 0.0
    %2306 = vmatprep.mubr.f32.mxu0 0.0
    %v2307 = vand.u32 %v1275, 4294901760
    %v2308 = vsub.f32 %v1275, %v2307
    %2309 = vmatmul.mubr.f32.gmra.mrb[0].mxu0 %v2308
    %v2310 = vpop.f32.mrb[0].mxu0
    %v2311 = vadd.f32 %v2202, %v2310
    %v2312 = vpop.f32.mrb[0].mxu0
    %v2313 = vadd.f32 %v2204, %v2312
    %2314 = vdwg.mxu0
    %v2315 = vand.u32 %v1127, 4294901760
    %2316 = vmatprep.subr.mxu0 %v2315
    %v2317 = vand.u32 %v1126, 4294901760
    %2318 = vmatpush1.msra.mxu0 %v2317
    %v2319 = vand.u32 %v1131, 4294901760
    %2320 = vmatprep.subr.mxu0 %v2319
    %v2321 = vand.u32 %v1130, 4294901760
    %2322 = vmatpush1.msra.mxu0 %v2321
    %v2323 = vand.u32 %v1135, 4294901760
    %2324 = vmatprep.subr.mxu0 %v2323
    %v2325 = vand.u32 %v1134, 4294901760
    %2326 = vmatpush1.msra.mxu0 %v2325
    %v2327 = vand.u32 %v1195, 4294901760
    %2328 = vmatprep.subr.mxu0 %v2327
    %v2329 = vand.u32 %v1194, 4294901760
    %2330 = vmatpush1.msra.mxu0 %v2329
    %v2331 = vand.u32 %v1199, 4294901760
    %2332 = vmatprep.subr.mxu0 %v2331
    %v2333 = vand.u32 %v1198, 4294901760
    %2334 = vmatpush1.msra.mxu0 %v2333
    %v2335 = vand.u32 %v1203, 4294901760
    %2336 = vmatprep.subr.mxu0 %v2335
    %v2337 = vand.u32 %v1202, 4294901760
    %2338 = vmatpush1.msra.mxu0 %v2337
    %v2339 = vand.u32 %v1263, 4294901760
    %2340 = vmatprep.subr.mxu0 %v2339
    %v2341 = vand.u32 %v1262, 4294901760
    %2342 = vmatpush1.msra.mxu0 %v2341
    %v2343 = vand.u32 %v1267, 4294901760
    %2344 = vmatprep.subr.mxu0 %v2343
    %v2345 = vand.u32 %v1266, 4294901760
    %2346 = vmatpush1.msra.mxu0 %v2345
    %v2347 = vand.u32 %v1271, 4294901760
    %2348 = vmatprep.subr.mxu0 %v2347
    %v2349 = vand.u32 %v1270, 4294901760
    %2350 = vmatpush1.msra.mxu0 %v2349
    %2351 = vmatprep.subr.mxu0 0.0
    %2352 = vmatpush1.msra.mxu0 0.0
    %2353 = vmatprep.subr.mxu0 0.0
    %2354 = vmatpush1.msra.mxu0 0.0
    %2355 = vmatprep.subr.mxu0 0.0
    %2356 = vmatpush1.msra.mxu0 0.0
    %2357 = vmatprep.subr.mxu0 0.0
    %2358 = vmatpush1.msra.mxu0 0.0
    %2359 = vmatprep.subr.mxu0 0.0
    %2360 = vmatpush1.msra.mxu0 0.0
    %2361 = vmatprep.subr.mxu0 0.0
    %2362 = vmatpush1.msra.mxu0 0.0
    %2363 = vmatprep.subr.mxu0 0.0
    %2364 = vmatpush1.msra.mxu0 0.0
    %2365 = vmatprep.subr.mxu0 0.0
    %2366 = vmatpush1.msra.mxu0 0.0
    %2367 = vmatprep.subr.mxu0 0.0
    %2368 = vmatpush1.msra.mxu0 0.0
    %2369 = vmatprep.subr.mxu0 0.0
    %2370 = vmatpush1.msra.mxu0 0.0
    %2371 = vmatprep.subr.mxu0 0.0
    %2372 = vmatpush1.msra.mxu0 0.0
    %2373 = vmatprep.subr.mxu0 0.0
    %2374 = vmatpush1.msra.mxu0 0.0
    %2375 = vmatprep.subr.mxu0 0.0
    %2376 = vmatpush1.msra.mxu0 0.0
    %2377 = vmatprep.subr.mxu0 0.0
    %2378 = vmatpush1.msra.mxu0 0.0
    %2379 = vmatprep.subr.mxu0 0.0
    %2380 = vmatpush1.msra.mxu0 0.0
    %2381 = vmatprep.subr.mxu0 0.0
    %2382 = vmatpush1.msra.mxu0 0.0
    %2383 = vmatprep.subr.mxu0 0.0
    %2384 = vmatpush1.msra.mxu0 0.0
    %2385 = vmatprep.subr.mxu0 0.0
    %2386 = vmatpush1.msra.mxu0 0.0
    %2387 = vmatprep.subr.mxu0 0.0
    %2388 = vmatpush1.msra.mxu0 0.0
    %2389 = vmatprep.subr.mxu0 0.0
    %2390 = vmatpush1.msra.mxu0 0.0
    %2391 = vmatprep.subr.mxu0 0.0
    %2392 = vmatpush1.msra.mxu0 0.0
    %2393 = vmatprep.subr.mxu0 0.0
    %2394 = vmatpush1.msra.mxu0 0.0
    %2395 = vmatprep.subr.mxu0 0.0
    %2396 = vmatpush1.msra.mxu0 0.0
    %2397 = vmatprep.mubr.f32.mxu0 0.0
    %v2398 = vand.u32 %v1275, 4294901760
    %v2399 = vsub.f32 %v1275, %v2398
    %v2400 = vand.u32 %v2399, 4294901760
    %2401 = vmatmul.mubr.f32.gmra.mrb[0].mxu0 %v2400
    %v2402 = vpop.f32.mrb[0].mxu0
    %v2403 = vadd.f32 %v2311, %v2402
    %v2404 = vpop.f32.mrb[0].mxu0
    %v2405 = vadd.f32 %v2313, %v2404
    %2406 = vdwg.mxu0
    %v2407 = vand.u32 %v1127, 4294901760
    %v2408 = vsub.f32 %v1127, %v2407
    %v2409 = vand.u32 %v2408, 4294901760
    %2410 = vmatprep.subr.mxu0 %v2409
    %v2411 = vand.u32 %v1126, 4294901760
    %v2412 = vsub.f32 %v1126, %v2411
    %v2413 = vand.u32 %v2412, 4294901760
    %2414 = vmatpush1.msra.mxu0 %v2413
    %v2415 = vand.u32 %v1131, 4294901760
    %v2416 = vsub.f32 %v1131, %v2415
    %v2417 = vand.u32 %v2416, 4294901760
    %2418 = vmatprep.subr.mxu0 %v2417
    %v2419 = vand.u32 %v1130, 4294901760
    %v2420 = vsub.f32 %v1130, %v2419
    %v2421 = vand.u32 %v2420, 4294901760
    %2422 = vmatpush1.msra.mxu0 %v2421
    %v2423 = vand.u32 %v1135, 4294901760
    %v2424 = vsub.f32 %v1135, %v2423
    %v2425 = vand.u32 %v2424, 4294901760
    %2426 = vmatprep.subr.mxu0 %v2425
    %v2427 = vand.u32 %v1134, 4294901760
    %v2428 = vsub.f32 %v1134, %v2427
    %v2429 = vand.u32 %v2428, 4294901760
    %2430 = vmatpush1.msra.mxu0 %v2429
    %v2431 = vand.u32 %v1195, 4294901760
    %v2432 = vsub.f32 %v1195, %v2431
    %v2433 = vand.u32 %v2432, 4294901760
    %2434 = vmatprep.subr.mxu0 %v2433
    %v2435 = vand.u32 %v1194, 4294901760
    %v2436 = vsub.f32 %v1194, %v2435
    %v2437 = vand.u32 %v2436, 4294901760
    %2438 = vmatpush1.msra.mxu0 %v2437
    %v2439 = vand.u32 %v1199, 4294901760
    %v2440 = vsub.f32 %v1199, %v2439
    %v2441 = vand.u32 %v2440, 4294901760
    %2442 = vmatprep.subr.mxu0 %v2441
    %v2443 = vand.u32 %v1198, 4294901760
    %v2444 = vsub.f32 %v1198, %v2443
    %v2445 = vand.u32 %v2444, 4294901760
    %2446 = vmatpush1.msra.mxu0 %v2445
    %v2447 = vand.u32 %v1203, 4294901760
    %v2448 = vsub.f32 %v1203, %v2447
    %v2449 = vand.u32 %v2448, 4294901760
    %2450 = vmatprep.subr.mxu0 %v2449
    %v2451 = vand.u32 %v1202, 4294901760
    %v2452 = vsub.f32 %v1202, %v2451
    %v2453 = vand.u32 %v2452, 4294901760
    %2454 = vmatpush1.msra.mxu0 %v2453
    %v2455 = vand.u32 %v1263, 4294901760
    %v2456 = vsub.f32 %v1263, %v2455
    %v2457 = vand.u32 %v2456, 4294901760
    %2458 = vmatprep.subr.mxu0 %v2457
    %v2459 = vand.u32 %v1262, 4294901760
    %v2460 = vsub.f32 %v1262, %v2459
    %v2461 = vand.u32 %v2460, 4294901760
    %2462 = vmatpush1.msra.mxu0 %v2461
    %v2463 = vand.u32 %v1267, 4294901760
    %v2464 = vsub.f32 %v1267, %v2463
    %v2465 = vand.u32 %v2464, 4294901760
    %2466 = vmatprep.subr.mxu0 %v2465
    %v2467 = vand.u32 %v1266, 4294901760
    %v2468 = vsub.f32 %v1266, %v2467
    %v2469 = vand.u32 %v2468, 4294901760
    %2470 = vmatpush1.msra.mxu0 %v2469
    %v2471 = vand.u32 %v1271, 4294901760
    %v2472 = vsub.f32 %v1271, %v2471
    %v2473 = vand.u32 %v2472, 4294901760
    %2474 = vmatprep.subr.mxu0 %v2473
    %v2475 = vand.u32 %v1270, 4294901760
    %v2476 = vsub.f32 %v1270, %v2475
    %v2477 = vand.u32 %v2476, 4294901760
    %2478 = vmatpush1.msra.mxu0 %v2477
    %2479 = vmatprep.subr.mxu0 0.0
    %2480 = vmatpush1.msra.mxu0 0.0
    %2481 = vmatprep.subr.mxu0 0.0
    %2482 = vmatpush1.msra.mxu0 0.0
    %2483 = vmatprep.subr.mxu0 0.0
    %2484 = vmatpush1.msra.mxu0 0.0
    %2485 = vmatprep.subr.mxu0 0.0
    %2486 = vmatpush1.msra.mxu0 0.0
    %2487 = vmatprep.subr.mxu0 0.0
    %2488 = vmatpush1.msra.mxu0 0.0
    %2489 = vmatprep.subr.mxu0 0.0
    %2490 = vmatpush1.msra.mxu0 0.0
    %2491 = vmatprep.subr.mxu0 0.0
    %2492 = vmatpush1.msra.mxu0 0.0
    %2493 = vmatprep.subr.mxu0 0.0
    %2494 = vmatpush1.msra.mxu0 0.0
    %2495 = vmatprep.subr.mxu0 0.0
    %2496 = vmatpush1.msra.mxu0 0.0
    %2497 = vmatprep.subr.mxu0 0.0
    %2498 = vmatpush1.msra.mxu0 0.0
    %2499 = vmatprep.subr.mxu0 0.0
    %2500 = vmatpush1.msra.mxu0 0.0
    %2501 = vmatprep.subr.mxu0 0.0
    %2502 = vmatpush1.msra.mxu0 0.0
    %2503 = vmatprep.subr.mxu0 0.0
    %2504 = vmatpush1.msra.mxu0 0.0
    %2505 = vmatprep.subr.mxu0 0.0
    %2506 = vmatpush1.msra.mxu0 0.0
    %2507 = vmatprep.subr.mxu0 0.0
    %2508 = vmatpush1.msra.mxu0 0.0
    %2509 = vmatprep.subr.mxu0 0.0
    %2510 = vmatpush1.msra.mxu0 0.0
    %2511 = vmatprep.subr.mxu0 0.0
    %2512 = vmatpush1.msra.mxu0 0.0
    %2513 = vmatprep.subr.mxu0 0.0
    %2514 = vmatpush1.msra.mxu0 0.0
    %2515 = vmatprep.subr.mxu0 0.0
    %2516 = vmatpush1.msra.mxu0 0.0
    %2517 = vmatprep.subr.mxu0 0.0
    %2518 = vmatpush1.msra.mxu0 0.0
    %2519 = vmatprep.subr.mxu0 0.0
    %2520 = vmatpush1.msra.mxu0 0.0
    %2521 = vmatprep.subr.mxu0 0.0
    %2522 = vmatpush1.msra.mxu0 0.0
    %2523 = vmatprep.subr.mxu0 0.0
    %2524 = vmatpush1.msra.mxu0 0.0
    %2525 = vmatprep.mubr.f32.mxu0 0.0
    %v2526 = vand.u32 %v1275, 4294901760
    %2527 = vmatmul.mubr.f32.gmra.mrb[0].mxu0 %v2526
    %v2528 = vpop.f32.mrb[0].mxu0
    %v2529 = vadd.f32 %v2403, %v2528
    %v2530 = vpop.f32.mrb[0].mxu0
    %v2531 = vadd.f32 %v2405, %v2530
    %2532 = vdwg.mxu0
    %v2533 = vand.u32 %v1127, 4294901760
    %2534 = vmatprep.subr.mxu0 %v2533
    %v2535 = vand.u32 %v1126, 4294901760
    %2536 = vmatpush1.msra.mxu0 %v2535
    %v2537 = vand.u32 %v1131, 4294901760
    %2538 = vmatprep.subr.mxu0 %v2537
    %v2539 = vand.u32 %v1130, 4294901760
    %2540 = vmatpush1.msra.mxu0 %v2539
    %v2541 = vand.u32 %v1135, 4294901760
    %2542 = vmatprep.subr.mxu0 %v2541
    %v2543 = vand.u32 %v1134, 4294901760
    %2544 = vmatpush1.msra.mxu0 %v2543
    %v2545 = vand.u32 %v1195, 4294901760
    %2546 = vmatprep.subr.mxu0 %v2545
    %v2547 = vand.u32 %v1194, 4294901760
    %2548 = vmatpush1.msra.mxu0 %v2547
    %v2549 = vand.u32 %v1199, 4294901760
    %2550 = vmatprep.subr.mxu0 %v2549
    %v2551 = vand.u32 %v1198, 4294901760
    %2552 = vmatpush1.msra.mxu0 %v2551
    %v2553 = vand.u32 %v1203, 4294901760
    %2554 = vmatprep.subr.mxu0 %v2553
    %v2555 = vand.u32 %v1202, 4294901760
    %2556 = vmatpush1.msra.mxu0 %v2555
    %v2557 = vand.u32 %v1263, 4294901760
    %2558 = vmatprep.subr.mxu0 %v2557
    %v2559 = vand.u32 %v1262, 4294901760
    %2560 = vmatpush1.msra.mxu0 %v2559
    %v2561 = vand.u32 %v1267, 4294901760
    %2562 = vmatprep.subr.mxu0 %v2561
    %v2563 = vand.u32 %v1266, 4294901760
    %2564 = vmatpush1.msra.mxu0 %v2563
    %v2565 = vand.u32 %v1271, 4294901760
    %2566 = vmatprep.subr.mxu0 %v2565
    %v2567 = vand.u32 %v1270, 4294901760
    %2568 = vmatpush1.msra.mxu0 %v2567
    %2569 = vmatprep.subr.mxu0 0.0
    %2570 = vmatpush1.msra.mxu0 0.0
    %2571 = vmatprep.subr.mxu0 0.0
    %2572 = vmatpush1.msra.mxu0 0.0
    %2573 = vmatprep.subr.mxu0 0.0
    %2574 = vmatpush1.msra.mxu0 0.0
    %2575 = vmatprep.subr.mxu0 0.0
    %2576 = vmatpush1.msra.mxu0 0.0
    %2577 = vmatprep.subr.mxu0 0.0
    %2578 = vmatpush1.msra.mxu0 0.0
    %2579 = vmatprep.subr.mxu0 0.0
    %2580 = vmatpush1.msra.mxu0 0.0
    %2581 = vmatprep.subr.mxu0 0.0
    %2582 = vmatpush1.msra.mxu0 0.0
    %2583 = vmatprep.subr.mxu0 0.0
    %2584 = vmatpush1.msra.mxu0 0.0
    %2585 = vmatprep.subr.mxu0 0.0
    %2586 = vmatpush1.msra.mxu0 0.0
    %2587 = vmatprep.subr.mxu0 0.0
    %2588 = vmatpush1.msra.mxu0 0.0
    %2589 = vmatprep.subr.mxu0 0.0
    %2590 = vmatpush1.msra.mxu0 0.0
    %2591 = vmatprep.subr.mxu0 0.0
    %2592 = vmatpush1.msra.mxu0 0.0
    %2593 = vmatprep.subr.mxu0 0.0
    %2594 = vmatpush1.msra.mxu0 0.0
    %2595 = vmatprep.subr.mxu0 0.0
    %2596 = vmatpush1.msra.mxu0 0.0
    %2597 = vmatprep.subr.mxu0 0.0
    %2598 = vmatpush1.msra.mxu0 0.0
    %2599 = vmatprep.subr.mxu0 0.0
    %2600 = vmatpush1.msra.mxu0 0.0
    %2601 = vmatprep.subr.mxu0 0.0
    %2602 = vmatpush1.msra.mxu0 0.0
    %2603 = vmatprep.subr.mxu0 0.0
    %2604 = vmatpush1.msra.mxu0 0.0
    %2605 = vmatprep.subr.mxu0 0.0
    %2606 = vmatpush1.msra.mxu0 0.0
    %2607 = vmatprep.subr.mxu0 0.0
    %2608 = vmatpush1.msra.mxu0 0.0
    %2609 = vmatprep.subr.mxu0 0.0
    %2610 = vmatpush1.msra.mxu0 0.0
    %2611 = vmatprep.subr.mxu0 0.0
    %2612 = vmatpush1.msra.mxu0 0.0
    %2613 = vmatprep.subr.mxu0 0.0
    %2614 = vmatpush1.msra.mxu0 0.0
    %2615 = vmatprep.mubr.f32.mxu0 0.0
    %v2616 = vand.u32 %v1275, 4294901760
    %2617 = vmatmul.mubr.f32.gmra.mrb[0].mxu0 %v2616
    %v2618 = vpop.f32.mrb[0].mxu0
    %v2619 = vadd.f32 %v2529, %v2618
    %v2620 = vpop.f32.mrb[0].mxu0
    %v2621 = vadd.f32 %v2531, %v2620
    %2622 = vdwg.mxu0
    %v2623 = vmul.f32 %v1946, %v207
    %v2624 = vmul.f32 %v1948, %v209
    %v2625 = vmul.f32 %v2619, %v211
    %v2626 = vmul.f32 %v2621, %v213
    %v2627 = vsub.f32 1.0, %v83
    %v2628 = vsub.f32 1.0, %v84
    %v2631 = vlaneseq
    %v2632 = vshrl.u32 %v2631, 7
    %v2633 = vsub.s32 0, %v2632
    %v2634 = vrot.slane %v2627, %v2633
    %v2635 = vlaneseq
    %v2636 = vshrl.u32 %v2635, 7
    %v2637 = vsub.s32 4, %v2636
    %v2638 = vrot.slane %v2627, %v2637
    %v2639 = vlaneseq
    %v2640 = vshrl.u32 %v2639, 7
    %v2641 = vsub.s32 0, %v2640
    %v2642 = vrot.slane %v2628, %v2641
    %v2643 = vlaneseq
    %v2644 = vshrl.u32 %v2643, 7
    %v2645 = vsub.s32 4, %v2644
    %v2646 = vrot.slane %v2628, %v2645
    %vm2651 = vcmask 1042432
    %v2652 = vsel %vm2651, %v2623, %v2634
    %v2653 = vsel %vm2651, %v2624, %v2638
    %v2654 = vsel %vm2651, %v2625, %v2642
    %v2655 = vsel %vm2651, %v2626, %v2646
    %v2660 = vcombine.low %v2652, %v2653
    %v2661 = vcombine.low %v2654, %v2655
    %2664 = vst [vmem:[#allocation2] sm:$0xff] %v2660
    %2665 = vst [vmem:[#allocation2 + $0x8] sm:$0xff] %v2661
    // Predicated region
    $region22: #{tpu_custom_call.1} parent=1 // pred_check
      _
    $region23: #{tpu_custom_call.1} parent=1 // pred_check_branch
      %2667 = sbr.rel (0) target = $region25
    $region24: #{tpu_custom_call.1} parent=1 // pred_region
      %s2669 = ssub.s32 256, 256
      %2670 = vsyncadd [#allocation3], %s2669
      %s2672 = sshll.u32 [#allocation2], 4
      %s2673 = int_to_ptr.vmem [resolvable:$true] %s2672
      %2675 = dma.vmem_to_hbm [thread:$0]  %s2673, 256, %s5, [#allocation3]
    $region25: #{tpu_custom_call.1} parent=1 // pred_fallthru
      _
    // Predicated region
    $region26: #{tpu_custom_call.1} parent=1 // pred_check
      _
    $region27: #{tpu_custom_call.1} parent=1 // pred_check_branch
      %2677 = sbr.rel (0) target = $region29
    $region28: #{tpu_custom_call.1} parent=1 // pred_region
      %2678 = dma.done [#allocation3], 256
    $region29: #{tpu_custom_call.1} parent=1 // pred_fallthru
      _
    %2679 = vsyncpa [#allocation3], 1

</llo_original>
